<compile_context>
chip_gen: v7x
topology: tpu7x:2x2x1
jax: 0.10.0
libtpu: 0.0.40
codegen_flags: <defaults>
</compile_context>

<pallas_src>
import functools

import jax
import jax.numpy as jnp
from jax.experimental import pallas as pl
from jax.experimental.pallas import tpu as pltpu


# ---------------------------------------------------------------------------
# Pallas kernel: fused qkv-projection + attention + out-projection + residual
# ---------------------------------------------------------------------------
def _spatial_attn_kernel(hn_ref, x_q_ref,
                         wqkv_ref, bqkv_ref, wo_ref, bo_ref,
                         o_ref,
                         q_scr, kT_scr, v_scr,
                         *, q_tile):
    """One grid step = one (q_tile, C) row-slab of one batch element."""
    qi = pl.program_id(1)
    C = wo_ref.shape[0]

    # ---- per-batch prologue: one fused, 3C-wide QKV projection ----
    @pl.when(qi == 0)
    def _():
        hn = hn_ref[0]                                               # (N, C) bf16
        qkv = jnp.dot(hn, wqkv_ref[...],
                      preferred_element_type=jnp.float32) + bqkv_ref[...]   # (N, 3C) f32
        # wq / bq were pre-scaled by C^-0.5 in the wrapper -> q needs no extra mul.
        q_scr[...] = qkv[:, :C].astype(jnp.bfloat16)
        # Store K transposed once per batch (one XLU transpose, amortized over all
        # query tiles) so the scores matmul below is a plain (Tq,C)@(C,N) MXU push.
        kT_scr[...] = jnp.transpose(qkv[:, C:2 * C]).astype(jnp.bfloat16)
        v_scr[...] = qkv[:, 2 * C:].astype(jnp.bfloat16)

    # ---- per-tile attention ----
    row0 = pl.multiple_of(qi * q_tile, q_tile)
    q = q_scr[pl.ds(row0, q_tile), :]                                # (Tq, C) bf16

    s = jnp.dot(q, kT_scr[...], preferred_element_type=jnp.float32)  # (Tq, N) f32
    s = s - jnp.max(s, axis=-1, keepdims=True)
    p = jnp.exp(s)
    inv = pl.reciprocal(jnp.sum(p, axis=-1, keepdims=True), approx=True)
    attn = (p * inv).astype(jnp.bfloat16)                            # (Tq, N) bf16

    o = jnp.dot(attn, v_scr[...], preferred_element_type=jnp.float32)        # (Tq, C)
    h_out = jnp.dot(o.astype(jnp.bfloat16), wo_ref[...],
                    preferred_element_type=jnp.float32) + bo_ref[...]
    o_ref[0] = (x_q_ref[0] + h_out).astype(o_ref.dtype)              # residual (f32)


def _pick_q_tile(N, max_tile=512):
    """Largest multiple-of-8 divisor of N not exceeding max_tile."""
    start = (min(N, max_tile) // 8) * 8
    for t in range(start, 7, -8):
        if N % t == 0:
            return t
    return N


def spatial_attn_core(hn, x_t, w_qkv, b_qkv, wo, bo, *, q_tile=None):
    """hn: (B, N, C) bf16 (normalized tokens); x_t: (B, N, C) f32 (residual).
    w_qkv: (C, 3C) bf16 (q part pre-scaled by C^-0.5); b_qkv: (1, 3C) f32.
    wo: (C, C) bf16; bo: (1, C) f32.  Returns (B, N, C) in x_t.dtype."""
    B, N, C = hn.shape
    if q_tile is None:
        q_tile = _pick_q_tile(N)
    assert N % q_tile == 0 and q_tile % 8 == 0, \
        "q_tile must divide N and be a multiple of 8"
    nq = N // q_tile

    hn_spec = pl.BlockSpec((1, N, C), lambda b, qi: (b, 0, 0))       # per-batch resident
    tile_spec = pl.BlockSpec((1, q_tile, C), lambda b, qi: (b, qi, 0))
    wqkv_spec = pl.BlockSpec((C, 3 * C), lambda b, qi: (0, 0))
    bqkv_spec = pl.BlockSpec((1, 3 * C), lambda b, qi: (0, 0))
    wo_spec = pl.BlockSpec((C, C), lambda b, qi: (0, 0))
    bo_spec = pl.BlockSpec((1, C), lambda b, qi: (0, 0))

    # VMEM budget from actual tile / scratch sizes (with 2x headroom), so we neither
    # hard-code an over-aggressive limit (v7x: 64 MiB/TC) nor starve the pipeline.
    vmem_bytes = (
        2 * N * C * 2                    # hn per-batch block (bf16, double-buffered)
        + 4 * q_tile * C * 4             # x tile + out tile (f32, double-buffered)
        + 2 * (3 * C * C + C * C) * 2    # fused qkv + proj_out weights (bf16, 2 bufs)
        + 2 * 4 * C * 4                  # biases (f32, 2 bufs)
        + 3 * N * C * 2                  # Q / K^T / V scratch (bf16)
        + N * 3 * C * 4                  # qkv f32 intermediate at qi == 0
        + 2 * q_tile * N * 4             # score slab + exp (f32)
    )
    vmem_limit = max(32 << 20, min(2 * vmem_bytes + (4 << 20), 100 << 20))

    return pl.pallas_call(
        functools.partial(_spatial_attn_kernel, q_tile=q_tile),
        out_shape=jax.ShapeDtypeStruct((B, N, C), x_t.dtype),
        grid_spec=pltpu.PrefetchScalarGridSpec(
            num_scalar_prefetch=0,
            grid=(B, nq),
            in_specs=[hn_spec, tile_spec,
                      wqkv_spec, bqkv_spec, wo_spec, bo_spec],
            out_specs=tile_spec,
            scratch_shapes=[pltpu.VMEM((N, C), jnp.bfloat16),    # Q (pre-scaled)
                            pltpu.VMEM((C, N), jnp.bfloat16),    # K^T
                            pltpu.VMEM((N, C), jnp.bfloat16)],   # V
        ),
        compiler_params=pltpu.CompilerParams(
            # NOTE: qi axis must stay "arbitrary" (sequential) — the Q/K^T/V scratch
            # is (re)initialized at qi == 0 of each batch element.
            dimension_semantics=("parallel", "arbitrary"),
            vmem_limit_bytes=int(vmem_limit),
        ),
    )(hn, x_t, w_qkv, b_qkv, wo, bo)


# ---------------------------------------------------------------------------
# Module wrapper (GroupNorm + layout plumbing in plain JAX)
# ---------------------------------------------------------------------------
def group_norm_tokens(x_t, gamma, beta, num_groups=32, eps=1e-6):
    """GroupNorm over token layout (B, N, C); matches torch.nn.GroupNorm semantics."""
    B, N, C = x_t.shape
    g = x_t.reshape(B, N, num_groups, C // num_groups)
    mean = jnp.mean(g, axis=(1, 3), keepdims=True)
    var = jnp.var(g, axis=(1, 3), keepdims=True)
    g = (g - mean) / jnp.sqrt(var + eps)
    return g.reshape(B, N, C) * gamma + beta


def init_params(key, channels):
    ks = jax.random.split(key, 10)
    w = channels ** -0.5
    return {
        "gn_gamma": 1.0 + 0.1 * jax.random.normal(ks[0], (channels,), jnp.float32),
        "gn_beta":  0.1 * jax.random.normal(ks[1], (channels,), jnp.float32),
        # 1x1 convs stored as (C_in, C_out) matrices: y = x_t @ W + b
        "wq": w * jax.random.normal(ks[2], (channels, channels), jnp.float32),
        "bq": w * jax.random.normal(ks[3], (1, channels), jnp.float32),
        "wk": w * jax.random.normal(ks[4], (channels, channels), jnp.float32),
        "bk": w * jax.random.normal(ks[5], (1, channels), jnp.float32),
        "wv": w * jax.random.normal(ks[6], (channels, channels), jnp.float32),
        "bv": w * jax.random.normal(ks[7], (1, channels), jnp.float32),
        "wo": w * jax.random.normal(ks[8], (channels, channels), jnp.float32),
        "bo": w * jax.random.normal(ks[9], (1, channels), jnp.float32),
    }


def spatial_self_attention(params, x, *, q_tile=None):
    """x: (B, C, H, W) -> (B, C, H, W). Pallas-fused forward."""
    B, C, H, W = x.shape
    N = H * W
    scale = float(C) ** (-0.5)
    x_t = jnp.transpose(x, (0, 2, 3, 1)).reshape(B, N, C)
    hn = group_norm_tokens(x_t, params["gn_gamma"], params["gn_beta"])
    # Fold the attention scale into the q projection, fuse Wq|Wk|Wv into one (C, 3C)
    # weight (single 3C-wide MXU matmul per batch), and pre-cast MXU operands to bf16
    # (accumulation stays f32 inside the kernel).
    w_qkv = jnp.concatenate([params["wq"] * scale, params["wk"], params["wv"]],
                            axis=1).astype(jnp.bfloat16)
    b_qkv = jnp.concatenate([params["bq"] * scale, params["bk"], params["bv"]],
                            axis=1)                                    # f32 (1, 3C)
    out_t = spatial_attn_core(hn.astype(jnp.bfloat16), x_t,
                              w_qkv, b_qkv,
                              params["wo"].astype(jnp.bfloat16), params["bo"],
                              q_tile=q_tile)
    return out_t.reshape(B, H, W, C).transpose(0, 3, 1, 2)


def spatial_self_attention_ref(params, x):
    """Pure-JAX f32 reference for the same forward math."""
    B, C, H, W = x.shape
    N = H * W
    scale = float(C) ** (-0.5)
    x_t = jnp.transpose(x, (0, 2, 3, 1)).reshape(B, N, C)
    hn = group_norm_tokens(x_t, params["gn_gamma"], params["gn_beta"])
    q = hn @ params["wq"] + params["bq"]
    k = hn @ params["wk"] + params["bk"]
    v = hn @ params["wv"] + params["bv"]
    s = jnp.einsum("bic,bjc->bij", q, k) * scale
    attn = jax.nn.softmax(s, axis=-1)
    o = jnp.einsum("bij,bjc->bic", attn, v)
    h_out = o @ params["wo"] + params["bo"]
    out_t = x_t + h_out
    return out_t.reshape(B, H, W, C).transpose(0, 3, 1, 2)


# ---------------------------------------------------------------------------
if __name__ == "__main__":
    # GroupNorm(num_groups=32) requires C % 32 == 0; C = 128 also makes every
    # kernel operand / store lane-dense (last dim a multiple of 128).
    B, C, H, W = 2, 128, 16, 16          # N = H*W = 256 tokens

    key = jax.random.PRNGKey(0)
    kp, kx = jax.random.split(key)
    params = init_params(kp, C)
    x = jax.random.normal(kx, (B, C, H, W), jnp.float32)

    out = spatial_self_attention(params, x)      # q_tile -> 256, grid = (2, 1)
    out = jax.block_until_ready(out)

    ref = spatial_self_attention_ref(params, x)
    ref = jax.block_until_ready(ref)

    assert out.shape == (B, C, H, W)
    # Tolerance covers bf16 MXU operands (f32 accumulation) and the approx-reciprocal
    # (EUP vrcp) softmax normalization vs. the pure-f32 reference.
    assert jnp.allclose(out, ref, atol=3e-2, rtol=3e-2), \
        "Pallas kernel mismatch vs JAX reference"

    print("KERNEL_OK")
</pallas_src>

<mosaic_0001>
module attributes {stable_mosaic.version = 11 : i64} {
  func.func @_spatial_attn_kernel(%arg0: i32, %arg1: i32, %arg2: memref<1x256x128xbf16, #tpu.memory_space<vmem>>, %arg3: memref<1x256x128xf32, #tpu.memory_space<vmem>>, %arg4: memref<128x384xbf16, #tpu.memory_space<vmem>>, %arg5: memref<1x384xf32, #tpu.memory_space<vmem>>, %arg6: memref<128x128xbf16, #tpu.memory_space<vmem>>, %arg7: memref<1x128xf32, #tpu.memory_space<vmem>>, %arg8: memref<1x256x128xf32, #tpu.memory_space<vmem>>, %arg9: memref<256x128xbf16, #tpu.memory_space<vmem>>, %arg10: memref<128x256xbf16, #tpu.memory_space<vmem>>, %arg11: memref<256x128xbf16, #tpu.memory_space<vmem>>) attributes {dimension_semantics = [#tpu.dimension_semantics<parallel>, #tpu.dimension_semantics<arbitrary>], iteration_bounds = array<i64: 2, 1>, scalar_prefetch = 0 : i64, scratch_operands = 3 : i64, tpu.core_type = #tpu.core_type<tc>, window_params = [{transform_indices = @transform_0, window_bounds = array<i64: 1, 256, 128>}, {transform_indices = @transform_1, window_bounds = array<i64: 1, 256, 128>}, {pipeline_mode = #tpu.pipeline_mode<synchronous>, transform_indices = @transform_2, window_bounds = array<i64: 128, 384>}, {pipeline_mode = #tpu.pipeline_mode<synchronous>, transform_indices = @transform_3, window_bounds = array<i64: 1, 384>}, {pipeline_mode = #tpu.pipeline_mode<synchronous>, transform_indices = @transform_4, window_bounds = array<i64: 128, 128>}, {pipeline_mode = #tpu.pipeline_mode<synchronous>, transform_indices = @transform_5, window_bounds = array<i64: 1, 128>}, {transform_indices = @transform_6, window_bounds = array<i64: 1, 256, 128>}]} {
    %c0_i32 = arith.constant 0 : i32
    %0 = arith.cmpi eq, %arg1, %c0_i32 : i32
    %1 = arith.extui %0 : i1 to i32
    %c0_i32_0 = arith.constant 0 : i32
    %2 = arith.cmpi ne, %1, %c0_i32_0 : i32
    scf.if %2 {
      %c0_19 = arith.constant 0 : index
      %c0_20 = arith.constant 0 : index
      %c0_21 = arith.constant 0 : index
      %34 = vector.load %arg2[%c0_19, %c0_20, %c0_21] : memref<1x256x128xbf16, #tpu.memory_space<vmem>>, vector<1x256x128xbf16>
      %35 = vector.shape_cast %34 : vector<1x256x128xbf16> to vector<256x128xbf16>
      %c0_22 = arith.constant 0 : index
      %c0_23 = arith.constant 0 : index
      %36 = vector.load %arg4[%c0_22, %c0_23] : memref<128x384xbf16, #tpu.memory_space<vmem>>, vector<128x384xbf16>
      %cst_24 = arith.constant dense<0.000000e+00> : vector<256x384xf32>
      %37 = tpu.matmul %35, %36, %cst_24 {dimension_numbers = #tpu.dot_dimension_numbers<[1], [0], [0], [1], [0, 0, 1, 1], [], []>} : vector<256x128xbf16>, vector<128x384xbf16>, vector<256x384xf32> -> vector<256x384xf32>
      %c0_25 = arith.constant 0 : index
      %c0_26 = arith.constant 0 : index
      %38 = vector.load %arg5[%c0_25, %c0_26] : memref<1x384xf32, #tpu.memory_space<vmem>>, vector<1x384xf32>
      %39 = vector.broadcast %38 : vector<1x384xf32> to vector<256x384xf32>
      %40 = arith.addf %37, %39 : vector<256x384xf32>
      %41 = vector.extract_strided_slice %40 {offsets = [0, 0], sizes = [256, 128], strides = [1, 1]} : vector<256x384xf32> to vector<256x128xf32>
      %42 = arith.truncf %41 : vector<256x128xf32> to vector<256x128xbf16>
      %c0_27 = arith.constant 0 : index
      %c0_28 = arith.constant 0 : index
      %43 = vector.load %arg9[%c0_27, %c0_28] : memref<256x128xbf16, #tpu.memory_space<vmem>>, vector<256x128xbf16>
      tpu.vector_store %arg9[%c0_27, %c0_28], %42 {strides = array<i32>} : memref<256x128xbf16, #tpu.memory_space<vmem>>, vector<256x128xbf16>,
      %44 = vector.extract_strided_slice %40 {offsets = [0, 128], sizes = [256, 128], strides = [1, 1]} : vector<256x384xf32> to vector<256x128xf32>
      %45 = tpu.transpose %44, [1, 0] : vector<256x128xf32> -> vector<128x256xf32>
      %46 = arith.truncf %45 : vector<128x256xf32> to vector<128x256xbf16>
      %c0_29 = arith.constant 0 : index
      %c0_30 = arith.constant 0 : index
      %47 = vector.load %arg10[%c0_29, %c0_30] : memref<128x256xbf16, #tpu.memory_space<vmem>>, vector<128x256xbf16>
      tpu.vector_store %arg10[%c0_29, %c0_30], %46 {strides = array<i32>} : memref<128x256xbf16, #tpu.memory_space<vmem>>, vector<128x256xbf16>,
      %48 = vector.extract_strided_slice %40 {offsets = [0, 256], sizes = [256, 128], strides = [1, 1]} : vector<256x384xf32> to vector<256x128xf32>
      %49 = arith.truncf %48 : vector<256x128xf32> to vector<256x128xbf16>
      %c0_31 = arith.constant 0 : index
      %c0_32 = arith.constant 0 : index
      %50 = vector.load %arg11[%c0_31, %c0_32] : memref<256x128xbf16, #tpu.memory_space<vmem>>, vector<256x128xbf16>
      tpu.vector_store %arg11[%c0_31, %c0_32], %49 {strides = array<i32>} : memref<256x128xbf16, #tpu.memory_space<vmem>>, vector<256x128xbf16>,
    } else {
    }
    %c256_i32 = arith.constant 256 : i32
    %3 = arith.muli %arg1, %c256_i32 : i32
    %4 = tpu.assume_multiple %3, 256 : i32
    %5 = arith.index_cast %4 : i32 to index
    %c0 = arith.constant 0 : index
    %6 = vector.load %arg9[%5, %c0] : memref<256x128xbf16, #tpu.memory_space<vmem>>, vector<256x128xbf16>
    %c0_1 = arith.constant 0 : index
    %c0_2 = arith.constant 0 : index
    %7 = vector.load %arg10[%c0_1, %c0_2] : memref<128x256xbf16, #tpu.memory_space<vmem>>, vector<128x256xbf16>
    %cst = arith.constant dense<0.000000e+00> : vector<256x256xf32>
    %8 = tpu.matmul %6, %7, %cst {dimension_numbers = #tpu.dot_dimension_numbers<[1], [0], [0], [1], [0, 0, 1, 1], [], []>} : vector<256x128xbf16>, vector<128x256xbf16>, vector<256x256xf32> -> vector<256x256xf32>
    %cst_3 = arith.constant dense<0xFF800000> : vector<256xf32>
    %9 = vector.multi_reduction <maximumf>, %8, %cst_3 [1] : vector<256x256xf32> to vector<256xf32>
    %10 = vector.shape_cast %9 : vector<256xf32> to vector<256x1xf32>
    %11 = vector.broadcast %10 : vector<256x1xf32> to vector<256x256xf32>
    %12 = arith.subf %8, %11 : vector<256x256xf32>
    %13 = math.exp %12 : vector<256x256xf32>
    %cst_4 = arith.constant dense<0.000000e+00> : vector<256xf32>
    %14 = vector.multi_reduction <add>, %13, %cst_4 [1] : vector<256x256xf32> to vector<256xf32>
    %15 = vector.shape_cast %14 : vector<256xf32> to vector<256x1xf32>
    %16 = tpu.reciprocal %15 {approx = true} : vector<256x1xf32> -> vector<256x1xf32>
    %17 = vector.broadcast %16 : vector<256x1xf32> to vector<256x256xf32>
    %18 = arith.mulf %13, %17 : vector<256x256xf32>
    %19 = arith.truncf %18 : vector<256x256xf32> to vector<256x256xbf16>
    %c0_5 = arith.constant 0 : index
    %c0_6 = arith.constant 0 : index
    %20 = vector.load %arg11[%c0_5, %c0_6] : memref<256x128xbf16, #tpu.memory_space<vmem>>, vector<256x128xbf16>
    %cst_7 = arith.constant dense<0.000000e+00> : vector<256x128xf32>
    %21 = tpu.matmul %19, %20, %cst_7 {dimension_numbers = #tpu.dot_dimension_numbers<[1], [0], [0], [1], [0, 0, 1, 1], [], []>} : vector<256x256xbf16>, vector<256x128xbf16>, vector<256x128xf32> -> vector<256x128xf32>
    %22 = arith.truncf %21 : vector<256x128xf32> to vector<256x128xbf16>
    %c0_8 = arith.constant 0 : index
    %c0_9 = arith.constant 0 : index
    %23 = vector.load %arg6[%c0_8, %c0_9] : memref<128x128xbf16, #tpu.memory_space<vmem>>, vector<128x128xbf16>
    %cst_10 = arith.constant dense<0.000000e+00> : vector<256x128xf32>
    %24 = tpu.matmul %22, %23, %cst_10 {dimension_numbers = #tpu.dot_dimension_numbers<[1], [0], [0], [1], [0, 0, 1, 1], [], []>} : vector<256x128xbf16>, vector<128x128xbf16>, vector<256x128xf32> -> vector<256x128xf32>
    %c0_11 = arith.constant 0 : index
    %c0_12 = arith.constant 0 : index
    %25 = vector.load %arg7[%c0_11, %c0_12] : memref<1x128xf32, #tpu.memory_space<vmem>>, vector<1x128xf32>
    %26 = vector.broadcast %25 : vector<1x128xf32> to vector<256x128xf32>
    %27 = arith.addf %24, %26 : vector<256x128xf32>
    %c0_13 = arith.constant 0 : index
    %c0_14 = arith.constant 0 : index
    %c0_15 = arith.constant 0 : index
    %28 = vector.load %arg3[%c0_13, %c0_14, %c0_15] : memref<1x256x128xf32, #tpu.memory_space<vmem>>, vector<1x256x128xf32>
    %29 = vector.shape_cast %28 : vector<1x256x128xf32> to vector<256x128xf32>
    %30 = arith.addf %29, %27 : vector<256x128xf32>
    %c0_16 = arith.constant 0 : index
    %c0_17 = arith.constant 0 : index
    %c0_18 = arith.constant 0 : index
    %31 = vector.load %arg8[%c0_16, %c0_17, %c0_18] : memref<1x256x128xf32, #tpu.memory_space<vmem>>, vector<1x256x128xf32>
    %32 = vector.shape_cast %31 : vector<1x256x128xf32> to vector<256x128xf32>
    %33 = vector.shape_cast %30 : vector<256x128xf32> to vector<1x256x128xf32>
    tpu.vector_store %arg8[%c0_16, %c0_17, %c0_18], %33 {strides = array<i32>} : memref<1x256x128xf32, #tpu.memory_space<vmem>>, vector<1x256x128xf32>,
    return
  }
  func.func @transform_0(%arg0: i32, %arg1: i32) -> (i32, i32, i32) {
    %c0_i32 = arith.constant 0 : i32
    %c0_i32_0 = arith.constant 0 : i32
    %c0_i32_1 = arith.constant 0 : i32
    return %arg0, %c0_i32, %c0_i32_0 : i32, i32, i32
  }
  func.func @transform_1(%arg0: i32, %arg1: i32) -> (i32, i32, i32) {
    %c0_i32 = arith.constant 0 : i32
    %c0_i32_0 = arith.constant 0 : i32
    return %arg0, %arg1, %c0_i32 : i32, i32, i32
  }
  func.func @transform_2(%arg0: i32, %arg1: i32) -> (i32, i32) {
    %c0_i32 = arith.constant 0 : i32
    %c0_i32_0 = arith.constant 0 : i32
    %c0_i32_1 = arith.constant 0 : i32
    return %c0_i32, %c0_i32_0 : i32, i32
  }
  func.func @transform_3(%arg0: i32, %arg1: i32) -> (i32, i32) {
    %c0_i32 = arith.constant 0 : i32
    %c0_i32_0 = arith.constant 0 : i32
    %c0_i32_1 = arith.constant 0 : i32
    return %c0_i32, %c0_i32_0 : i32, i32
  }
  func.func @transform_4(%arg0: i32, %arg1: i32) -> (i32, i32) {
    %c0_i32 = arith.constant 0 : i32
    %c0_i32_0 = arith.constant 0 : i32
    %c0_i32_1 = arith.constant 0 : i32
    return %c0_i32, %c0_i32_0 : i32, i32
  }
  func.func @transform_5(%arg0: i32, %arg1: i32) -> (i32, i32) {
    %c0_i32 = arith.constant 0 : i32
    %c0_i32_0 = arith.constant 0 : i32
    %c0_i32_1 = arith.constant 0 : i32
    return %c0_i32, %c0_i32_0 : i32, i32
  }
  func.func @transform_6(%arg0: i32, %arg1: i32) -> (i32, i32, i32) {
    %c0_i32 = arith.constant 0 : i32
    %c0_i32_0 = arith.constant 0 : i32
    return %arg0, %arg1, %c0_i32 : i32, i32, i32
  }
}

</mosaic_0001>

<llo_original>
// kernel: tpu_custom_call.1
$region0: #{tpu_custom_call.1}
  #allocation0 [shape = 'u32[]', space=smem, size = 0x4, offset = 0x4, fixed_abs, tag = 'smem constant byte address 0x4 - core index']
  #allocation1 [shape = 'u32[144,128]{1,0:T(1,128)}', space=vmem, size = 0x12000, scoped, tag = 'internal scratch']
  #allocation2 [shape = 'bf16[256,128]{1,0:T(16,128)(2,1)}', space=vmem, size = 0x10000, scoped, tag = 'scratch operand']
  #allocation3 [shape = 'bf16[128,256]{1,0:T(16,128)(2,1)}', space=vmem, size = 0x10000, scoped, tag = 'scratch operand']
  #allocation4 [shape = 'bf16[256,128]{1,0:T(16,128)(2,1)}', space=vmem, size = 0x10000, scoped, tag = 'scratch operand']
  %s0 = inlined_call_operand.hbm [shape: bf16[2,256,128], index: 0, kind: input, shape index: {}]
  %s1 = inlined_call_operand.hbm [shape: f32[2,256,128], index: 1, kind: input, shape index: {}]
  %s2 = inlined_call_operand.hbm [shape: bf16[128,384], index: 2, kind: input, shape index: {}]
  %s3 = inlined_call_operand.vmem [shape: f32[1,384], index: 3, kind: input, shape index: {}]
  %s4 = inlined_call_operand.hbm [shape: bf16[128,128], index: 4, kind: input, shape index: {}]
  %s5 = inlined_call_operand.vmem [shape: f32[1,128], index: 5, kind: input, shape index: {}]
  %s6 = inlined_call_operand.hbm [shape: f32[2,256,128], index: 6, kind: output, shape index: {}]
  %s7 = sld [smem:[#allocation0]]
  $region77: #{tpu_custom_call.1} parent=0
    _
  %s9 = ssub.s32 1, %s7
  %s10 = scalar_select 0, %s9, %s7
  $region1: #{tpu_custom_call.1} parent=0
    #allocation5 [shape = 'u8[131072]{0}', space=vmem, size = 0x20000, scoped, tag = 'input window, operand 0']
    #allocation6 [shape = 's32[2]{0}', space=sflag, size = 0x8, scoped, tag = 'scoped memory for tpu_custom_call.1']
    #allocation7 [shape = 's32[2]{0}', space=sflag, size = 0x8, scoped, tag = 'scoped memory for tpu_custom_call.1']
    #allocation8 [shape = 'u8[262144]{0}', space=vmem, size = 0x40000, scoped, tag = 'input window, operand 1']
    #allocation9 [shape = 's32[2]{0}', space=sflag, size = 0x8, scoped, tag = 'scoped memory for tpu_custom_call.1']
    #allocation10 [shape = 'u8[98304]{0}', space=vmem, size = 0x18000, scoped, tag = 'input window, operand 2, single buffered']
    #allocation11 [shape = 'u8[32768]{0}', space=vmem, size = 0x8000, scoped, tag = 'input window, operand 4, single buffered']
    #allocation12 [shape = 's32[1]{0}', space=sflag, size = 0x4, scoped, tag = 'scoped memory for tpu_custom_call.1']
    #allocation13 [shape = 'u8[262144]{0}', space=vmem, size = 0x40000, scoped, tag = 'output window, operand 0']
    %11 = vsyncpa [#allocation6], 0
    %s12 = scalar_lea.sflag [#allocation6], 1
    %13 = vsyncpa %s12, 0
    %14 = vsyncpa [#allocation9], 0
    %s15 = scalar_lea.sflag [#allocation9], 1
    %16 = vsyncpa %s15, 0
    %17 = vsyncpa [#allocation12], 0
    %18 = vsyncpa [#allocation7], 0
    %s19 = scalar_lea.sflag [#allocation7], 1
    %20 = vsyncpa %s19, 0
    loop: start=0, step=1, limit=4
    $region2: #{tpu_custom_call.1} parent=1 // loop_pre_header
      _
    $region3: #{tpu_custom_call.1} parent=1 // loop_header
      %s22 = sphi 0, %s26
      %p23 = scmp.ge.s32.totalorder %s22, 4
      %s29 = sphi 0, %s41
      %s30 = sphi 0, %s37
      %s31 = sphi 0, %s29
      %s32 = sphi 0, %s30
      %s33 = sphi 0, %s31
      %s34 = sphi 0, %s32
      %s44 = sphi 0, %s46
      %s47 = sphi 0, %s44
      %s48 = sphi 0, %s47
      %s64 = sphi 0, %s48
      %s72 = sphi 0, %s74
      %s75 = sphi 0, %s72
      %s76 = sphi 0, %s75
      %s92 = sphi 0, %s76
      %s96 = sphi 0, %s96
      %s98 = sphi 0, %s96
      %s99 = sphi 0, %s98
      %s113 = sphi 0, %s99
      %s117 = sphi 0, %s117
      %s119 = sphi 0, %s117
      %s120 = sphi 0, %s119
      %s134 = sphi 0, %s120
      %s138 = sphi 0, %s138
      %s140 = sphi 0, %s138
      %s141 = sphi 0, %s140
      %s155 = sphi 0, %s141
      %s159 = sphi 0, %s159
      %s161 = sphi 0, %s159
      %s162 = sphi 0, %s161
      %s176 = sphi 0, %s162
      %s184 = sphi 0, %s186
      %s187 = sphi 0, %s184
      %s188 = sphi 0, %s187
      %s204 = sphi 0, %s188
    $region4: #{tpu_custom_call.1} parent=1 // loop_header_branch
      %25 = sbr.rel (%p23) target = $region8
    $region5: #{tpu_custom_call.1} parent=1 // loop_body
      %s27 = ssub.s32 %s22, 1
      %s28 = ssub.s32 %s22, 2
      %s35 = sadd.s32 1, %s30
      %p36 = scmp.ge.s32.totalorder %s35, 1
      %s37 = scalar_select %p36, 0, %s35
      %s38 = sadd.s32 1, %s29
      %s39 = scalar_select %p36, %s38, %s29
      %p40 = scmp.ge.s32.totalorder %s39, 2
      %s41 = scalar_select %p40, 0, %s39
      %s42 = ssub.s32 %s29, %s41
      %p43 = scmp.eq.s32.totalorder %s42, 0
      %s45 = sadd.s32 %s44, 1
      %s46 = scalar_select %p43, %s44, %s45
      %p49 = pneg %p43
      %p50 = scmp.eq.s32.totalorder %s22, 1
      %p51 = por %p49, %p50
      %p52 = scmp.ne.s32.totalorder %s44, %s47
      %p53 = scmp.eq.s32.totalorder %s22, 0
      %p54 = por %p52, %p53
      %p55 = scmp.ne.s32.totalorder %s44, %s47
      %p56 = scmp.eq.s32.totalorder %s27, 1
      %p57 = por %p55, %p56
      %p58 = scmp.ne.s32.totalorder %s47, %s48
      %p59 = scmp.eq.s32.totalorder %s27, 0
      %p60 = por %p58, %p59
      %p61 = scmp.ne.s32.totalorder %s47, %s48
      %p62 = scmp.eq.s32.totalorder %s28, 1
      %p63 = por %p61, %p62
      %p65 = scmp.ne.s32.totalorder %s48, %s64
      %p66 = scmp.eq.s32.totalorder %s28, 0
      %p67 = por %p65, %p66
      %s68 = ssub.s32 %s29, %s41
      %s69 = ssub.s32 %s30, %s37
      %s70 = sor.u32 %s68, %s69
      %p71 = scmp.eq.s32.totalorder %s70, 0
      %s73 = sadd.s32 %s72, 1
      %s74 = scalar_select %p71, %s72, %s73
      %p77 = pneg %p71
      %p78 = scmp.eq.s32.totalorder %s22, 1
      %p79 = por %p77, %p78
      %p80 = scmp.ne.s32.totalorder %s72, %s75
      %p81 = scmp.eq.s32.totalorder %s22, 0
      %p82 = por %p80, %p81
      %p83 = scmp.ne.s32.totalorder %s72, %s75
      %p84 = scmp.eq.s32.totalorder %s27, 1
      %p85 = por %p83, %p84
      %p86 = scmp.ne.s32.totalorder %s75, %s76
      %p87 = scmp.eq.s32.totalorder %s27, 0
      %p88 = por %p86, %p87
      %p89 = scmp.ne.s32.totalorder %s75, %s76
      %p90 = scmp.eq.s32.totalorder %s28, 1
      %p91 = por %p89, %p90
      %p93 = scmp.ne.s32.totalorder %s76, %s92
      %p94 = scmp.eq.s32.totalorder %s28, 0
      %p95 = por %p93, %p94
      %s97 = sadd.s32 %s96, 1
      %p100 = scmp.eq.s32.totalorder %s22, 1
      %p101 = scmp.ne.s32.totalorder %s96, %s98
      %p102 = scmp.eq.s32.totalorder %s22, 0
      %p103 = por %p101, %p102
      %p104 = scmp.ne.s32.totalorder %s96, %s98
      %p105 = scmp.eq.s32.totalorder %s27, 1
      %p106 = por %p104, %p105
      %p107 = scmp.ne.s32.totalorder %s98, %s99
      %p108 = scmp.eq.s32.totalorder %s27, 0
      %p109 = por %p107, %p108
      %p110 = scmp.ne.s32.totalorder %s98, %s99
      %p111 = scmp.eq.s32.totalorder %s28, 1
      %p112 = por %p110, %p111
      %p114 = scmp.ne.s32.totalorder %s99, %s113
      %p115 = scmp.eq.s32.totalorder %s28, 0
      %p116 = por %p114, %p115
      %s118 = sadd.s32 %s117, 1
      %p121 = scmp.eq.s32.totalorder %s22, 1
      %p122 = scmp.ne.s32.totalorder %s117, %s119
      %p123 = scmp.eq.s32.totalorder %s22, 0
      %p124 = por %p122, %p123
      %p125 = scmp.ne.s32.totalorder %s117, %s119
      %p126 = scmp.eq.s32.totalorder %s27, 1
      %p127 = por %p125, %p126
      %p128 = scmp.ne.s32.totalorder %s119, %s120
      %p129 = scmp.eq.s32.totalorder %s27, 0
      %p130 = por %p128, %p129
      %p131 = scmp.ne.s32.totalorder %s119, %s120
      %p132 = scmp.eq.s32.totalorder %s28, 1
      %p133 = por %p131, %p132
      %p135 = scmp.ne.s32.totalorder %s120, %s134
      %p136 = scmp.eq.s32.totalorder %s28, 0
      %p137 = por %p135, %p136
      %s139 = sadd.s32 %s138, 1
      %p142 = scmp.eq.s32.totalorder %s22, 1
      %p143 = scmp.ne.s32.totalorder %s138, %s140
      %p144 = scmp.eq.s32.totalorder %s22, 0
      %p145 = por %p143, %p144
      %p146 = scmp.ne.s32.totalorder %s138, %s140
      %p147 = scmp.eq.s32.totalorder %s27, 1
      %p148 = por %p146, %p147
      %p149 = scmp.ne.s32.totalorder %s140, %s141
      %p150 = scmp.eq.s32.totalorder %s27, 0
      %p151 = por %p149, %p150
      %p152 = scmp.ne.s32.totalorder %s140, %s141
      %p153 = scmp.eq.s32.totalorder %s28, 1
      %p154 = por %p152, %p153
      %p156 = scmp.ne.s32.totalorder %s141, %s155
      %p157 = scmp.eq.s32.totalorder %s28, 0
      %p158 = por %p156, %p157
      %s160 = sadd.s32 %s159, 1
      %p163 = scmp.eq.s32.totalorder %s22, 1
      %p164 = scmp.ne.s32.totalorder %s159, %s161
      %p165 = scmp.eq.s32.totalorder %s22, 0
      %p166 = por %p164, %p165
      %p167 = scmp.ne.s32.totalorder %s159, %s161
      %p168 = scmp.eq.s32.totalorder %s27, 1
      %p169 = por %p167, %p168
      %p170 = scmp.ne.s32.totalorder %s161, %s162
      %p171 = scmp.eq.s32.totalorder %s27, 0
      %p172 = por %p170, %p171
      %p173 = scmp.ne.s32.totalorder %s161, %s162
      %p174 = scmp.eq.s32.totalorder %s28, 1
      %p175 = por %p173, %p174
      %p177 = scmp.ne.s32.totalorder %s162, %s176
      %p178 = scmp.eq.s32.totalorder %s28, 0
      %p179 = por %p177, %p178
      %s180 = ssub.s32 %s29, %s41
      %s181 = ssub.s32 %s30, %s37
      %s182 = sor.u32 %s180, %s181
      %p183 = scmp.eq.s32.totalorder %s182, 0
      %s185 = sadd.s32 %s184, 1
      %s186 = scalar_select %p183, %s184, %s185
      %p189 = pneg %p183
      %p190 = scmp.eq.s32.totalorder %s22, 1
      %p191 = por %p189, %p190
      %p192 = scmp.ne.s32.totalorder %s184, %s187
      %p193 = scmp.eq.s32.totalorder %s22, 0
      %p194 = por %p192, %p193
      %p195 = scmp.ne.s32.totalorder %s184, %s187
      %p196 = scmp.eq.s32.totalorder %s27, 1
      %p197 = por %p195, %p196
      %p198 = scmp.ne.s32.totalorder %s187, %s188
      %p199 = scmp.eq.s32.totalorder %s27, 0
      %p200 = por %p198, %p199
      %p201 = scmp.ne.s32.totalorder %s187, %s188
      %p202 = scmp.eq.s32.totalorder %s28, 1
      %p203 = por %p201, %p202
      %p205 = scmp.ne.s32.totalorder %s188, %s204
      %p206 = scmp.eq.s32.totalorder %s28, 0
      %p207 = por %p205, %p206
      %p208 = scmp.le.s32.totalorder 1, %s22
      %p209 = scmp.lt.s32.totalorder %s22, 3
      %p210 = pnand %p208, %p209
      %p211 = pneg %p210
      // Predicated region
      $region9: #{tpu_custom_call.1} parent=5 // pred_check
        _
      $region10: #{tpu_custom_call.1} parent=5 // pred_check_branch
        %213 = sbr.rel (%p210) target = $region12
      $region11: #{tpu_custom_call.1} parent=5 // pred_region
        %s214 = ssub.s32 %s22, 1
        // Predicated region
        $region13: #{tpu_custom_call.1} parent=11 // pred_check
          %p215 = pneg %p109
        $region14: #{tpu_custom_call.1} parent=11 // pred_check_branch
          %217 = sbr.rel (%p215) target = $region16
        $region15: #{tpu_custom_call.1} parent=11 // pred_region
          %s219 = ssub.s32 3072, 3072
          %220 = vsyncadd [#allocation9], %s219
          %s221 = sshll.u32 [#allocation10], 4
          %s222 = int_to_ptr.vmem [resolvable:$true] %s221
          %227 = dma.hbm_to_vmem [thread:$0]  %s2, 3072, %s222, [#allocation9], 192, 192, 12
        $region16: #{tpu_custom_call.1} parent=11 // pred_fallthru
          _
        // Predicated region
        $region17: #{tpu_custom_call.1} parent=11 // pred_check
          %p228 = pneg %p130
        $region18: #{tpu_custom_call.1} parent=11 // pred_check_branch
          %230 = sbr.rel (%p228) target = $region20
        $region19: #{tpu_custom_call.1} parent=11 // pred_region
          _
        $region20: #{tpu_custom_call.1} parent=11 // pred_fallthru
          _
        // Predicated region
        $region21: #{tpu_custom_call.1} parent=11 // pred_check
          %p231 = pneg %p151
        $region22: #{tpu_custom_call.1} parent=11 // pred_check_branch
          %233 = sbr.rel (%p231) target = $region24
        $region23: #{tpu_custom_call.1} parent=11 // pred_region
          %s235 = ssub.s32 1024, 1024
          %236 = vsyncadd [#allocation12], %s235
          %s237 = sshll.u32 [#allocation11], 4
          %s238 = int_to_ptr.vmem [resolvable:$true] %s237
          %243 = dma.hbm_to_vmem [thread:$0]  %s4, 1024, %s238, [#allocation12], 64, 64, 4
        $region24: #{tpu_custom_call.1} parent=11 // pred_fallthru
          _
        // Predicated region
        $region25: #{tpu_custom_call.1} parent=11 // pred_check
          %p244 = pneg %p172
        $region26: #{tpu_custom_call.1} parent=11 // pred_check_branch
          %246 = sbr.rel (%p244) target = $region28
        $region27: #{tpu_custom_call.1} parent=11 // pred_region
          _
        $region28: #{tpu_custom_call.1} parent=11 // pred_fallthru
          _
      $region12: #{tpu_custom_call.1} parent=5 // pred_fallthru
        _
      %p247 = scmp.lt.s32.totalorder %s22, 2
      // Predicated region
      $region29: #{tpu_custom_call.1} parent=5 // pred_check
        %p248 = pneg %p247
      $region30: #{tpu_custom_call.1} parent=5 // pred_check_branch
        %250 = sbr.rel (%p248) target = $region32
      $region31: #{tpu_custom_call.1} parent=5 // pred_region
        // Predicated region
        $region33: #{tpu_custom_call.1} parent=31 // pred_check
          %p251 = pneg %p54
        $region34: #{tpu_custom_call.1} parent=31 // pred_check_branch
          %253 = sbr.rel (%p251) target = $region36
        $region35: #{tpu_custom_call.1} parent=31 // pred_region
          %s254 = sand.u32 %s44, 1
          %s255 = scalar_lea.sflag [#allocation6], %s254
          %s256 = sand.u32 %s44, 1
          %s257 = smul.addr %s256, 128
          %s258 = scalar_lea.vmem [#allocation5], %s257
          %s260 = ssub.s32 2048, 2048
          %261 = vsyncadd %s255, %s260
          %s262 = smul.addr %s29, 32
          %s263 = smul.addr %s262, 64
          %s264 = scalar_lea.hbm %s0, %s263
          %s265 = sshll.u32 %s258, 4
          %s266 = int_to_ptr.vmem [resolvable:$true] %s265
          %271 = dma.hbm_to_vmem [thread:$0]  %s264, 2048, %s266, %s255, 64, 64, 4
        $region36: #{tpu_custom_call.1} parent=31 // pred_fallthru
          _
        // Predicated region
        $region37: #{tpu_custom_call.1} parent=31 // pred_check
          %p272 = pneg %p82
        $region38: #{tpu_custom_call.1} parent=31 // pred_check_branch
          %274 = sbr.rel (%p272) target = $region40
        $region39: #{tpu_custom_call.1} parent=31 // pred_region
          %s275 = sand.u32 %s22, 1
          %s276 = scalar_lea.sflag [#allocation9], %s275
          %s277 = sand.u32 %s72, 1
          %s278 = smul.addr %s277, 256
          %s279 = scalar_lea.vmem [#allocation8], %s278
          %s280 = smul.u32 32, %s30
          %s282 = ssub.s32 4096, 4096
          %283 = vsyncadd %s276, %s282
          %s284 = smul.addr %s29, 32
          %s285 = sadd.s32 %s280, %s284
          %s286 = smul.addr %s285, 128
          %s287 = scalar_lea.hbm %s1, %s286
          %s288 = sshll.u32 %s279, 4
          %s289 = int_to_ptr.vmem [resolvable:$true] %s288
          %294 = dma.hbm_to_vmem [thread:$0]  %s287, 4096, %s289, %s276, 128, 128, 8
        $region40: #{tpu_custom_call.1} parent=31 // pred_fallthru
          _
      $region32: #{tpu_custom_call.1} parent=5 // pred_fallthru
        _
      %p295 = scmp.le.s32.totalorder 1, %s22
      %p296 = scmp.lt.s32.totalorder %s22, 3
      %p297 = pnand %p295, %p296
      %p298 = pneg %p297
      // Predicated region
      $region41: #{tpu_custom_call.1} parent=5 // pred_check
        _
      $region42: #{tpu_custom_call.1} parent=5 // pred_check_branch
        %300 = sbr.rel (%p297) target = $region44
      $region43: #{tpu_custom_call.1} parent=5 // pred_region
        %s301 = ssub.s32 %s22, 1
        %s302 = sand.u32 %s47, 1
        %s303 = scalar_lea.sflag [#allocation6], %s302
        %s304 = sand.u32 %s47, 1
        %s305 = smul.addr %s304, 128
        %s306 = scalar_lea.vmem [#allocation5], %s305
        // Predicated region
        $region45: #{tpu_custom_call.1} parent=43 // pred_check
          %p307 = pneg %p60
        $region46: #{tpu_custom_call.1} parent=43 // pred_check_branch
          %309 = sbr.rel (%p307) target = $region48
        $region47: #{tpu_custom_call.1} parent=43 // pred_region
          %310 = dma.done %s303, 2048
        $region48: #{tpu_custom_call.1} parent=43 // pred_fallthru
          _
        %s311 = sand.u32 %s27, 1
        %s312 = scalar_lea.sflag [#allocation9], %s311
        %s313 = sand.u32 %s75, 1
        %s314 = smul.addr %s313, 256
        %s315 = scalar_lea.vmem [#allocation8], %s314
        // Predicated region
        $region49: #{tpu_custom_call.1} parent=43 // pred_check
          %p316 = pneg %p88
        $region50: #{tpu_custom_call.1} parent=43 // pred_check_branch
          %318 = sbr.rel (%p316) target = $region52
        $region51: #{tpu_custom_call.1} parent=43 // pred_region
          %319 = dma.done %s312, 4096
        $region52: #{tpu_custom_call.1} parent=43 // pred_fallthru
          _
        // Predicated region
        $region53: #{tpu_custom_call.1} parent=43 // pred_check
          %p320 = pneg %p109
        $region54: #{tpu_custom_call.1} parent=43 // pred_check_branch
          %322 = sbr.rel (%p320) target = $region56
        $region55: #{tpu_custom_call.1} parent=43 // pred_region
          %323 = dma.done [#allocation9], 3072
        $region56: #{tpu_custom_call.1} parent=43 // pred_fallthru
          _
        // Predicated region
        $region57: #{tpu_custom_call.1} parent=43 // pred_check
          %p324 = pneg %p151
        $region58: #{tpu_custom_call.1} parent=43 // pred_check_branch
          %326 = sbr.rel (%p324) target = $region60
        $region59: #{tpu_custom_call.1} parent=43 // pred_region
          %327 = dma.done [#allocation12], 1024
        $region60: #{tpu_custom_call.1} parent=43 // pred_fallthru
          _
        %s328 = sand.u32 %s47, 1
        %s329 = scalar_lea.sflag [#allocation6], %s328
        %s330 = sand.u32 %s47, 1
        %s331 = smul.addr %s330, 128
        %s332 = scalar_lea.vmem [#allocation5], %s331
        %p333 = pneg %p60
        %p334 = pneg %p57
        %s335 = sand.u32 %s27, 1
        %s336 = scalar_lea.sflag [#allocation9], %s335
        %s337 = sand.u32 %s75, 1
        %s338 = smul.addr %s337, 256
        %s339 = scalar_lea.vmem [#allocation8], %s338
        %p340 = pneg %p88
        %p341 = pneg %p85
        %p342 = pneg %p109
        %p343 = pneg %p106
        %p344 = pneg %p130
        %p345 = pneg %p127
        %p346 = pneg %p151
        %p347 = pneg %p148
        %p348 = pneg %p172
        %p349 = pneg %p169
        %p350 = pneg %p200
        %p351 = pneg %p197
        %s352 = sand.u32 %s187, 1
        %s353 = scalar_lea.sflag [#allocation7], %s352
        %s354 = sand.u32 %s187, 1
        %s355 = smul.addr %s354, 256
        %s356 = scalar_lea.vmem [#allocation13], %s355
        %s357 = smul.u32 32, %s32
        %s358 = smul.u32 32, %s32
        %p360 = scmp.eq.s32.totalorder %s32, 0
        // Predicated region
        $region61: #{tpu_custom_call.1} parent=43 // pred_check
          %p361 = pneg %p360
        $region62: #{tpu_custom_call.1} parent=43 // pred_check_branch
          %363 = sbr.rel (%p361) target = $region64
        $region63: #{tpu_custom_call.1} parent=43 // pred_region
          %v364 = vld [vmem:[%s306] sm:$0xf]
          %v365 = vld [vmem:[%s306 + $0x4] sm:$0xf]
          %v366 = vld [vmem:[%s306 + $0x8] sm:$0xf]
          %v367 = vld [vmem:[%s306 + $0xc] sm:$0xf]
          %v368 = vld [vmem:[%s306 + $0x10] sm:$0xf]
          %v369 = vld [vmem:[%s306 + $0x14] sm:$0xf]
          %v370 = vld [vmem:[%s306 + $0x18] sm:$0xf]
          %v371 = vld [vmem:[%s306 + $0x1c] sm:$0xf]
          %v372 = vld [vmem:[%s306 + $0x20] sm:$0xf]
          %v373 = vld [vmem:[%s306 + $0x24] sm:$0xf]
          %v374 = vld [vmem:[%s306 + $0x28] sm:$0xf]
          %v375 = vld [vmem:[%s306 + $0x2c] sm:$0xf]
          %v376 = vld [vmem:[%s306 + $0x30] sm:$0xf]
          %v377 = vld [vmem:[%s306 + $0x34] sm:$0xf]
          %v378 = vld [vmem:[%s306 + $0x38] sm:$0xf]
          %v379 = vld [vmem:[%s306 + $0x3c] sm:$0xf]
          %v380 = vld [vmem:[%s306 + $0x40] sm:$0xf]
          %v381 = vld [vmem:[%s306 + $0x44] sm:$0xf]
          %v382 = vld [vmem:[%s306 + $0x48] sm:$0xf]
          %v383 = vld [vmem:[%s306 + $0x4c] sm:$0xf]
          %v384 = vld [vmem:[%s306 + $0x50] sm:$0xf]
          %v385 = vld [vmem:[%s306 + $0x54] sm:$0xf]
          %v386 = vld [vmem:[%s306 + $0x58] sm:$0xf]
          %v387 = vld [vmem:[%s306 + $0x5c] sm:$0xf]
          %v388 = vld [vmem:[%s306 + $0x60] sm:$0xf]
          %v389 = vld [vmem:[%s306 + $0x64] sm:$0xf]
          %v390 = vld [vmem:[%s306 + $0x68] sm:$0xf]
          %v391 = vld [vmem:[%s306 + $0x6c] sm:$0xf]
          %v392 = vld [vmem:[%s306 + $0x70] sm:$0xf]
          %v393 = vld [vmem:[%s306 + $0x74] sm:$0xf]
          %v394 = vld [vmem:[%s306 + $0x78] sm:$0xf]
          %v395 = vld [vmem:[%s306 + $0x7c] sm:$0xf]
          %v396 = vld [vmem:[#allocation10] sm:$0xff]
          %v397 = vld [vmem:[#allocation10 + $0x8] sm:$0xf]
          %v398 = vld [vmem:[#allocation10 + $0xc] sm:$0xff]
          %v399 = vld [vmem:[#allocation10 + $0x14] sm:$0xf]
          %v400 = vld [vmem:[#allocation10 + $0x18] sm:$0xff]
          %v401 = vld [vmem:[#allocation10 + $0x20] sm:$0xf]
          %v402 = vld [vmem:[#allocation10 + $0x24] sm:$0xff]
          %v403 = vld [vmem:[#allocation10 + $0x2c] sm:$0xf]
          %v404 = vld [vmem:[#allocation10 + $0x30] sm:$0xff]
          %v405 = vld [vmem:[#allocation10 + $0x38] sm:$0xf]
          %v406 = vld [vmem:[#allocation10 + $0x3c] sm:$0xff]
          %v407 = vld [vmem:[#allocation10 + $0x44] sm:$0xf]
          %v408 = vld [vmem:[#allocation10 + $0x48] sm:$0xff]
          %v409 = vld [vmem:[#allocation10 + $0x50] sm:$0xf]
          %v410 = vld [vmem:[#allocation10 + $0x54] sm:$0xff]
          %v411 = vld [vmem:[#allocation10 + $0x5c] sm:$0xf]
          %v412 = vld [vmem:[#allocation10 + $0x60] sm:$0xff]
          %v413 = vld [vmem:[#allocation10 + $0x68] sm:$0xf]
          %v414 = vld [vmem:[#allocation10 + $0x6c] sm:$0xff]
          %v415 = vld [vmem:[#allocation10 + $0x74] sm:$0xf]
          %v416 = vld [vmem:[#allocation10 + $0x78] sm:$0xff]
          %v417 = vld [vmem:[#allocation10 + $0x80] sm:$0xf]
          %v418 = vld [vmem:[#allocation10 + $0x84] sm:$0xff]
          %v419 = vld [vmem:[#allocation10 + $0x8c] sm:$0xf]
          %v420 = vld [vmem:[#allocation10 + $0x90] sm:$0xff]
          %v421 = vld [vmem:[#allocation10 + $0x98] sm:$0xf]
          %v422 = vld [vmem:[#allocation10 + $0x9c] sm:$0xff]
          %v423 = vld [vmem:[#allocation10 + $0xa4] sm:$0xf]
          %v424 = vld [vmem:[#allocation10 + $0xa8] sm:$0xff]
          %v425 = vld [vmem:[#allocation10 + $0xb0] sm:$0xf]
          %v426 = vld [vmem:[#allocation10 + $0xb4] sm:$0xff]
          %v427 = vld [vmem:[#allocation10 + $0xbc] sm:$0xf]
          %v428 = vld [vmem:[%s3] sm:$0x7]
          %v430 = vlaneseq
          %v431 = vshrl.u32 %v430, 7
          %v432 = vsub.s32 0, %v431
          %v433 = vrot.slane %v428, %v432
          %v434 = vlaneseq
          %v435 = vshrl.u32 %v434, 7
          %v436 = vsub.s32 1, %v435
          %v437 = vrot.slane %v428, %v436
          %v438 = vlaneseq
          %v439 = vshrl.u32 %v438, 7
          %v440 = vsub.s32 2, %v439
          %v441 = vrot.slane %v428, %v440
          %v477 = vunpack.c.l.b16 %v364
          %v478 = vunpack.c.l.b16 %v365
          %v479 = vunpack.c.l.b16 %v366
          %v480 = vunpack.c.l.b16 %v367
          %v481 = vunpack.c.l.b16 %v368
          %v482 = vunpack.c.l.b16 %v369
          %v483 = vunpack.c.l.b16 %v370
          %v484 = vunpack.c.l.b16 %v371
          %v485 = vunpack.c.l.b16 %v372
          %v486 = vunpack.c.l.b16 %v373
          %v487 = vunpack.c.l.b16 %v374
          %v488 = vunpack.c.l.b16 %v375
          %v489 = vunpack.c.l.b16 %v376
          %v490 = vunpack.c.l.b16 %v377
          %v491 = vunpack.c.l.b16 %v378
          %v492 = vunpack.c.l.b16 %v379
          %v493 = vunpack.c.l.b16 %v380
          %v494 = vunpack.c.l.b16 %v381
          %v495 = vunpack.c.l.b16 %v382
          %v496 = vunpack.c.l.b16 %v383
          %v497 = vunpack.c.l.b16 %v384
          %v498 = vunpack.c.l.b16 %v385
          %v499 = vunpack.c.l.b16 %v386
          %v500 = vunpack.c.l.b16 %v387
          %v501 = vunpack.c.l.b16 %v388
          %v502 = vunpack.c.l.b16 %v389
          %v503 = vunpack.c.l.b16 %v390
          %v504 = vunpack.c.l.b16 %v391
          %v505 = vunpack.c.l.b16 %v392
          %v506 = vunpack.c.l.b16 %v393
          %v507 = vunpack.c.l.b16 %v394
          %v508 = vunpack.c.l.b16 %v395
          %v509 = vpack.c.b16 %v478, %v477
          %v510 = vpack.c.b16 %v480, %v479
          %v511 = vpack.c.b16 %v482, %v481
          %v512 = vpack.c.b16 %v484, %v483
          %v513 = vpack.c.b16 %v486, %v485
          %v514 = vpack.c.b16 %v488, %v487
          %v515 = vpack.c.b16 %v490, %v489
          %v516 = vpack.c.b16 %v492, %v491
          %v517 = vpack.c.b16 %v494, %v493
          %v518 = vpack.c.b16 %v496, %v495
          %v519 = vpack.c.b16 %v498, %v497
          %v520 = vpack.c.b16 %v500, %v499
          %v521 = vpack.c.b16 %v502, %v501
          %v522 = vpack.c.b16 %v504, %v503
          %v523 = vpack.c.b16 %v506, %v505
          %v524 = vpack.c.b16 %v508, %v507
          %v573 = vunpack.c.l.b16 %v396
          %v574 = vunpack.c.h.b16 %v396
          %v575 = vunpack.c.l.b16 %v397
          %v576 = vunpack.c.l.b16 %v398
          %v577 = vunpack.c.h.b16 %v398
          %v578 = vunpack.c.l.b16 %v399
          %v579 = vunpack.c.l.b16 %v400
          %v580 = vunpack.c.h.b16 %v400
          %v581 = vunpack.c.l.b16 %v401
          %v582 = vunpack.c.l.b16 %v402
          %v583 = vunpack.c.h.b16 %v402
          %v584 = vunpack.c.l.b16 %v403
          %v585 = vunpack.c.l.b16 %v404
          %v586 = vunpack.c.h.b16 %v404
          %v587 = vunpack.c.l.b16 %v405
          %v588 = vunpack.c.l.b16 %v406
          %v589 = vunpack.c.h.b16 %v406
          %v590 = vunpack.c.l.b16 %v407
          %v591 = vunpack.c.l.b16 %v408
          %v592 = vunpack.c.h.b16 %v408
          %v593 = vunpack.c.l.b16 %v409
          %v594 = vunpack.c.l.b16 %v410
          %v595 = vunpack.c.h.b16 %v410
          %v596 = vunpack.c.l.b16 %v411
          %v597 = vunpack.c.l.b16 %v412
          %v598 = vunpack.c.h.b16 %v412
          %v599 = vunpack.c.l.b16 %v413
          %v600 = vunpack.c.l.b16 %v414
          %v601 = vunpack.c.h.b16 %v414
          %v602 = vunpack.c.l.b16 %v415
          %v603 = vunpack.c.l.b16 %v416
          %v604 = vunpack.c.h.b16 %v416
          %v605 = vunpack.c.l.b16 %v417
          %v606 = vunpack.c.l.b16 %v418
          %v607 = vunpack.c.h.b16 %v418
          %v608 = vunpack.c.l.b16 %v419
          %v609 = vunpack.c.l.b16 %v420
          %v610 = vunpack.c.h.b16 %v420
          %v611 = vunpack.c.l.b16 %v421
          %v612 = vunpack.c.l.b16 %v422
          %v613 = vunpack.c.h.b16 %v422
          %v614 = vunpack.c.l.b16 %v423
          %v615 = vunpack.c.l.b16 %v424
          %v616 = vunpack.c.h.b16 %v424
          %v617 = vunpack.c.l.b16 %v425
          %v618 = vunpack.c.l.b16 %v426
          %v619 = vunpack.c.h.b16 %v426
          %v620 = vunpack.c.l.b16 %v427
          %v621 = vpack.c.b16 %v576, %v573
          %v622 = vpack.c.b16 %v577, %v574
          %v623 = vpack.c.b16 %v578, %v575
          %v624 = vpack.c.b16 %v582, %v579
          %v625 = vpack.c.b16 %v583, %v580
          %v626 = vpack.c.b16 %v584, %v581
          %v627 = vpack.c.b16 %v588, %v585
          %v628 = vpack.c.b16 %v589, %v586
          %v629 = vpack.c.b16 %v590, %v587
          %v630 = vpack.c.b16 %v594, %v591
          %v631 = vpack.c.b16 %v595, %v592
          %v632 = vpack.c.b16 %v596, %v593
          %v633 = vpack.c.b16 %v600, %v597
          %v634 = vpack.c.b16 %v601, %v598
          %v635 = vpack.c.b16 %v602, %v599
          %v636 = vpack.c.b16 %v606, %v603
          %v637 = vpack.c.b16 %v607, %v604
          %v638 = vpack.c.b16 %v608, %v605
          %v639 = vpack.c.b16 %v612, %v609
          %v640 = vpack.c.b16 %v613, %v610
          %v641 = vpack.c.b16 %v614, %v611
          %v642 = vpack.c.b16 %v618, %v615
          %v643 = vpack.c.b16 %v619, %v616
          %v644 = vpack.c.b16 %v620, %v617
          %669 = vmatprep.subr.bf16.mxu0 %v622
          %670 = vmatpush1.bf16.msra.mxu0 %v621
          %671 = vmatprep.subr.bf16.mxu0 %v625
          %672 = vmatpush1.bf16.msra.mxu0 %v624
          %673 = vmatprep.subr.bf16.mxu0 %v628
          %674 = vmatpush1.bf16.msra.mxu0 %v627
          %675 = vmatprep.subr.bf16.mxu0 %v631
          %676 = vmatpush1.bf16.msra.mxu0 %v630
          %677 = vmatprep.subr.bf16.mxu0 %v634
          %678 = vmatpush1.bf16.msra.mxu0 %v633
          %679 = vmatprep.subr.bf16.mxu0 %v637
          %680 = vmatpush1.bf16.msra.mxu0 %v636
          %681 = vmatprep.subr.bf16.mxu0 %v640
          %682 = vmatpush1.bf16.msra.mxu0 %v639
          %683 = vmatprep.subr.bf16.mxu0 %v643
          %684 = vmatpush1.bf16.msra.mxu0 %v642
          %685 = vmatprep.subr.bf16.mxu0 0
          %686 = vmatpush1.bf16.msra.mxu0 0
          %687 = vmatprep.subr.bf16.mxu0 0
          %688 = vmatpush1.bf16.msra.mxu0 0
          %689 = vmatprep.subr.bf16.mxu0 0
          %690 = vmatpush1.bf16.msra.mxu0 0
          %691 = vmatprep.subr.bf16.mxu0 0
          %692 = vmatpush1.bf16.msra.mxu0 0
          %693 = vmatprep.subr.bf16.mxu0 0
          %694 = vmatpush1.bf16.msra.mxu0 0
          %695 = vmatprep.subr.bf16.mxu0 0
          %696 = vmatpush1.bf16.msra.mxu0 0
          %697 = vmatprep.subr.bf16.mxu0 0
          %698 = vmatpush1.bf16.msra.mxu0 0
          %699 = vmatprep.subr.bf16.mxu0 0
          %700 = vmatpush1.bf16.msra.mxu0 0
          %701 = vmatprep.mubr.bf16.mxu0 0
          %702 = vmatmul.mubr.bf16.gmra.mrb[0].mxu0 %v509
          %v703 = vpop.f32.mrb[0].mxu0
          %v704 = vadd.f32 %v433, %v703
          %v705 = vpop.f32.mrb[0].mxu0
          %v706 = vadd.f32 %v437, %v705
          %v707 = vpop.f32.mrb[0].mxu0
          %v708 = vadd.f32 %v433, %v707
          %v709 = vpop.f32.mrb[0].mxu0
          %v710 = vadd.f32 %v437, %v709
          %711 = vmatprep.mubr.bf16.mxu0 0
          %712 = vmatmul.mubr.bf16.gmra.mrb[0].mxu0 %v510
          %v713 = vpop.f32.mrb[0].mxu0
          %v714 = vadd.f32 %v433, %v713
          %v715 = vpop.f32.mrb[0].mxu0
          %v716 = vadd.f32 %v437, %v715
          %v717 = vpop.f32.mrb[0].mxu0
          %v718 = vadd.f32 %v433, %v717
          %v719 = vpop.f32.mrb[0].mxu0
          %v720 = vadd.f32 %v437, %v719
          %721 = vmatprep.mubr.bf16.mxu0 0
          %722 = vmatmul.mubr.bf16.gmra.mrb[0].mxu0 %v511
          %v723 = vpop.f32.mrb[0].mxu0
          %v724 = vadd.f32 %v433, %v723
          %v725 = vpop.f32.mrb[0].mxu0
          %v726 = vadd.f32 %v437, %v725
          %v727 = vpop.f32.mrb[0].mxu0
          %v728 = vadd.f32 %v433, %v727
          %v729 = vpop.f32.mrb[0].mxu0
          %v730 = vadd.f32 %v437, %v729
          %731 = vmatprep.mubr.bf16.mxu0 0
          %732 = vmatmul.mubr.bf16.gmra.mrb[0].mxu0 %v512
          %v733 = vpop.f32.mrb[0].mxu0
          %v734 = vadd.f32 %v433, %v733
          %v735 = vpop.f32.mrb[0].mxu0
          %v736 = vadd.f32 %v437, %v735
          %v737 = vpop.f32.mrb[0].mxu0
          %v738 = vadd.f32 %v433, %v737
          %v739 = vpop.f32.mrb[0].mxu0
          %v740 = vadd.f32 %v437, %v739
          %741 = vmatprep.mubr.bf16.mxu0 0
          %742 = vmatmul.mubr.bf16.gmra.mrb[0].mxu0 %v513
          %v743 = vpop.f32.mrb[0].mxu0
          %v744 = vadd.f32 %v433, %v743
          %v745 = vpop.f32.mrb[0].mxu0
          %v746 = vadd.f32 %v437, %v745
          %v747 = vpop.f32.mrb[0].mxu0
          %v748 = vadd.f32 %v433, %v747
          %v749 = vpop.f32.mrb[0].mxu0
          %v750 = vadd.f32 %v437, %v749
          %751 = vmatprep.mubr.bf16.mxu0 0
          %752 = vmatmul.mubr.bf16.gmra.mrb[0].mxu0 %v514
          %v753 = vpop.f32.mrb[0].mxu0
          %v754 = vadd.f32 %v433, %v753
          %v755 = vpop.f32.mrb[0].mxu0
          %v756 = vadd.f32 %v437, %v755
          %v757 = vpop.f32.mrb[0].mxu0
          %v758 = vadd.f32 %v433, %v757
          %v759 = vpop.f32.mrb[0].mxu0
          %v760 = vadd.f32 %v437, %v759
          %761 = vmatprep.mubr.bf16.mxu0 0
          %762 = vmatmul.mubr.bf16.gmra.mrb[0].mxu0 %v515
          %v763 = vpop.f32.mrb[0].mxu0
          %v764 = vadd.f32 %v433, %v763
          %v765 = vpop.f32.mrb[0].mxu0
          %v766 = vadd.f32 %v437, %v765
          %v767 = vpop.f32.mrb[0].mxu0
          %v768 = vadd.f32 %v433, %v767
          %v769 = vpop.f32.mrb[0].mxu0
          %v770 = vadd.f32 %v437, %v769
          %771 = vmatprep.mubr.bf16.mxu0 0
          %772 = vmatmul.mubr.bf16.gmra.mrb[0].mxu0 %v516
          %v773 = vpop.f32.mrb[0].mxu0
          %v774 = vadd.f32 %v433, %v773
          %v775 = vpop.f32.mrb[0].mxu0
          %v776 = vadd.f32 %v437, %v775
          %v777 = vpop.f32.mrb[0].mxu0
          %v778 = vadd.f32 %v433, %v777
          %v779 = vpop.f32.mrb[0].mxu0
          %v780 = vadd.f32 %v437, %v779
          %781 = vmatprep.mubr.bf16.mxu0 0
          %782 = vmatmul.mubr.bf16.gmra.mrb[0].mxu0 %v517
          %v783 = vpop.f32.mrb[0].mxu0
          %v784 = vadd.f32 %v433, %v783
          %v785 = vpop.f32.mrb[0].mxu0
          %v786 = vadd.f32 %v437, %v785
          %v787 = vpop.f32.mrb[0].mxu0
          %v788 = vadd.f32 %v433, %v787
          %v789 = vpop.f32.mrb[0].mxu0
          %v790 = vadd.f32 %v437, %v789
          %791 = vmatprep.mubr.bf16.mxu0 0
          %792 = vmatmul.mubr.bf16.gmra.mrb[0].mxu0 %v518
          %v793 = vpop.f32.mrb[0].mxu0
          %v794 = vadd.f32 %v433, %v793
          %v795 = vpop.f32.mrb[0].mxu0
          %v796 = vadd.f32 %v437, %v795
          %v797 = vpop.f32.mrb[0].mxu0
          %v798 = vadd.f32 %v433, %v797
          %v799 = vpop.f32.mrb[0].mxu0
          %v800 = vadd.f32 %v437, %v799
          %801 = vmatprep.mubr.bf16.mxu0 0
          %802 = vmatmul.mubr.bf16.gmra.mrb[0].mxu0 %v519
          %v803 = vpop.f32.mrb[0].mxu0
          %v804 = vadd.f32 %v433, %v803
          %v805 = vpop.f32.mrb[0].mxu0
          %v806 = vadd.f32 %v437, %v805
          %v807 = vpop.f32.mrb[0].mxu0
          %v808 = vadd.f32 %v433, %v807
          %v809 = vpop.f32.mrb[0].mxu0
          %v810 = vadd.f32 %v437, %v809
          %811 = vmatprep.mubr.bf16.mxu0 0
          %812 = vmatmul.mubr.bf16.gmra.mrb[0].mxu0 %v520
          %v813 = vpop.f32.mrb[0].mxu0
          %v814 = vadd.f32 %v433, %v813
          %v815 = vpop.f32.mrb[0].mxu0
          %v816 = vadd.f32 %v437, %v815
          %v817 = vpop.f32.mrb[0].mxu0
          %v818 = vadd.f32 %v433, %v817
          %v819 = vpop.f32.mrb[0].mxu0
          %v820 = vadd.f32 %v437, %v819
          %821 = vmatprep.mubr.bf16.mxu0 0
          %822 = vmatmul.mubr.bf16.gmra.mrb[0].mxu0 %v521
          %v823 = vpop.f32.mrb[0].mxu0
          %v824 = vadd.f32 %v433, %v823
          %v825 = vpop.f32.mrb[0].mxu0
          %v826 = vadd.f32 %v437, %v825
          %v827 = vpop.f32.mrb[0].mxu0
          %v828 = vadd.f32 %v433, %v827
          %v829 = vpop.f32.mrb[0].mxu0
          %v830 = vadd.f32 %v437, %v829
          %831 = vmatprep.mubr.bf16.mxu0 0
          %832 = vmatmul.mubr.bf16.gmra.mrb[0].mxu0 %v522
          %v833 = vpop.f32.mrb[0].mxu0
          %v834 = vadd.f32 %v433, %v833
          %v835 = vpop.f32.mrb[0].mxu0
          %v836 = vadd.f32 %v437, %v835
          %v837 = vpop.f32.mrb[0].mxu0
          %v838 = vadd.f32 %v433, %v837
          %v839 = vpop.f32.mrb[0].mxu0
          %v840 = vadd.f32 %v437, %v839
          %841 = vmatprep.mubr.bf16.mxu0 0
          %842 = vmatmul.mubr.bf16.gmra.mrb[0].mxu0 %v523
          %v843 = vpop.f32.mrb[0].mxu0
          %v844 = vadd.f32 %v433, %v843
          %v845 = vpop.f32.mrb[0].mxu0
          %v846 = vadd.f32 %v437, %v845
          %v847 = vpop.f32.mrb[0].mxu0
          %v848 = vadd.f32 %v433, %v847
          %v849 = vpop.f32.mrb[0].mxu0
          %v850 = vadd.f32 %v437, %v849
          %851 = vmatprep.mubr.bf16.mxu0 0
          %852 = vmatmul.mubr.bf16.gmra.mrb[0].mxu0 %v524
          %v853 = vpop.f32.mrb[0].mxu0
          %v854 = vadd.f32 %v433, %v853
          %v855 = vpop.f32.mrb[0].mxu0
          %v856 = vadd.f32 %v437, %v855
          %v857 = vpop.f32.mrb[0].mxu0
          %v858 = vadd.f32 %v433, %v857
          %v859 = vpop.f32.mrb[0].mxu0
          %v860 = vadd.f32 %v437, %v859
          %861 = vdwg.mxu0
          %862 = vmatprep.subr.bf16.mxu0 0
          %863 = vmatpush1.bf16.msra.mxu0 %v623
          %864 = vmatprep.subr.bf16.mxu0 0
          %865 = vmatpush1.bf16.msra.mxu0 %v626
          %866 = vmatprep.subr.bf16.mxu0 0
          %867 = vmatpush1.bf16.msra.mxu0 %v629
          %868 = vmatprep.subr.bf16.mxu0 0
          %869 = vmatpush1.bf16.msra.mxu0 %v632
          %870 = vmatprep.subr.bf16.mxu0 0
          %871 = vmatpush1.bf16.msra.mxu0 %v635
          %872 = vmatprep.subr.bf16.mxu0 0
          %873 = vmatpush1.bf16.msra.mxu0 %v638
          %874 = vmatprep.subr.bf16.mxu0 0
          %875 = vmatpush1.bf16.msra.mxu0 %v641
          %876 = vmatprep.subr.bf16.mxu0 0
          %877 = vmatpush1.bf16.msra.mxu0 %v644
          %878 = vmatprep.subr.bf16.mxu0 0
          %879 = vmatpush1.bf16.msra.mxu0 0
          %880 = vmatprep.subr.bf16.mxu0 0
          %881 = vmatpush1.bf16.msra.mxu0 0
          %882 = vmatprep.subr.bf16.mxu0 0
          %883 = vmatpush1.bf16.msra.mxu0 0
          %884 = vmatprep.subr.bf16.mxu0 0
          %885 = vmatpush1.bf16.msra.mxu0 0
          %886 = vmatprep.subr.bf16.mxu0 0
          %887 = vmatpush1.bf16.msra.mxu0 0
          %888 = vmatprep.subr.bf16.mxu0 0
          %889 = vmatpush1.bf16.msra.mxu0 0
          %890 = vmatprep.subr.bf16.mxu0 0
          %891 = vmatpush1.bf16.msra.mxu0 0
          %892 = vmatprep.subr.bf16.mxu0 0
          %893 = vmatpush1.bf16.msra.mxu0 0
          %894 = vmatprep.mubr.bf16.mxu0 0
          %895 = vmatmul.mubr.bf16.gmra.mrb[0].mxu0 %v509
          %v896 = vpop.f32.mrb[0].mxu0
          %v897 = vadd.f32 %v441, %v896
          %v898 = vpop.f32.mrb[0].mxu0
          %v899 = vpop.f32.mrb[0].mxu0
          %v900 = vadd.f32 %v441, %v899
          %v901 = vpop.f32.mrb[0].mxu0
          %902 = vmatprep.mubr.bf16.mxu0 0
          %903 = vmatmul.mubr.bf16.gmra.mrb[0].mxu0 %v510
          %v904 = vpop.f32.mrb[0].mxu0
          %v905 = vadd.f32 %v441, %v904
          %v906 = vpop.f32.mrb[0].mxu0
          %v907 = vpop.f32.mrb[0].mxu0
          %v908 = vadd.f32 %v441, %v907
          %v909 = vpop.f32.mrb[0].mxu0
          %910 = vmatprep.mubr.bf16.mxu0 0
          %911 = vmatmul.mubr.bf16.gmra.mrb[0].mxu0 %v511
          %v912 = vpop.f32.mrb[0].mxu0
          %v913 = vadd.f32 %v441, %v912
          %v914 = vpop.f32.mrb[0].mxu0
          %v915 = vpop.f32.mrb[0].mxu0
          %v916 = vadd.f32 %v441, %v915
          %v917 = vpop.f32.mrb[0].mxu0
          %918 = vmatprep.mubr.bf16.mxu0 0
          %919 = vmatmul.mubr.bf16.gmra.mrb[0].mxu0 %v512
          %v920 = vpop.f32.mrb[0].mxu0
          %v921 = vadd.f32 %v441, %v920
          %v922 = vpop.f32.mrb[0].mxu0
          %v923 = vpop.f32.mrb[0].mxu0
          %v924 = vadd.f32 %v441, %v923
          %v925 = vpop.f32.mrb[0].mxu0
          %926 = vmatprep.mubr.bf16.mxu0 0
          %927 = vmatmul.mubr.bf16.gmra.mrb[0].mxu0 %v513
          %v928 = vpop.f32.mrb[0].mxu0
          %v929 = vadd.f32 %v441, %v928
          %v930 = vpop.f32.mrb[0].mxu0
          %v931 = vpop.f32.mrb[0].mxu0
          %v932 = vadd.f32 %v441, %v931
          %v933 = vpop.f32.mrb[0].mxu0
          %934 = vmatprep.mubr.bf16.mxu0 0
          %935 = vmatmul.mubr.bf16.gmra.mrb[0].mxu0 %v514
          %v936 = vpop.f32.mrb[0].mxu0
          %v937 = vadd.f32 %v441, %v936
          %v938 = vpop.f32.mrb[0].mxu0
          %v939 = vpop.f32.mrb[0].mxu0
          %v940 = vadd.f32 %v441, %v939
          %v941 = vpop.f32.mrb[0].mxu0
          %942 = vmatprep.mubr.bf16.mxu0 0
          %943 = vmatmul.mubr.bf16.gmra.mrb[0].mxu0 %v515
          %v944 = vpop.f32.mrb[0].mxu0
          %v945 = vadd.f32 %v441, %v944
          %v946 = vpop.f32.mrb[0].mxu0
          %v947 = vpop.f32.mrb[0].mxu0
          %v948 = vadd.f32 %v441, %v947
          %v949 = vpop.f32.mrb[0].mxu0
          %950 = vmatprep.mubr.bf16.mxu0 0
          %951 = vmatmul.mubr.bf16.gmra.mrb[0].mxu0 %v516
          %v952 = vpop.f32.mrb[0].mxu0
          %v953 = vadd.f32 %v441, %v952
          %v954 = vpop.f32.mrb[0].mxu0
          %v955 = vpop.f32.mrb[0].mxu0
          %v956 = vadd.f32 %v441, %v955
          %v957 = vpop.f32.mrb[0].mxu0
          %958 = vmatprep.mubr.bf16.mxu0 0
          %959 = vmatmul.mubr.bf16.gmra.mrb[0].mxu0 %v517
          %v960 = vpop.f32.mrb[0].mxu0
          %v961 = vadd.f32 %v441, %v960
          %v962 = vpop.f32.mrb[0].mxu0
          %v963 = vpop.f32.mrb[0].mxu0
          %v964 = vadd.f32 %v441, %v963
          %v965 = vpop.f32.mrb[0].mxu0
          %966 = vmatprep.mubr.bf16.mxu0 0
          %967 = vmatmul.mubr.bf16.gmra.mrb[0].mxu0 %v518
          %v968 = vpop.f32.mrb[0].mxu0
          %v969 = vadd.f32 %v441, %v968
          %v970 = vpop.f32.mrb[0].mxu0
          %v971 = vpop.f32.mrb[0].mxu0
          %v972 = vadd.f32 %v441, %v971
          %v973 = vpop.f32.mrb[0].mxu0
          %974 = vmatprep.mubr.bf16.mxu0 0
          %975 = vmatmul.mubr.bf16.gmra.mrb[0].mxu0 %v519
          %v976 = vpop.f32.mrb[0].mxu0
          %v977 = vadd.f32 %v441, %v976
          %v978 = vpop.f32.mrb[0].mxu0
          %v979 = vpop.f32.mrb[0].mxu0
          %v980 = vadd.f32 %v441, %v979
          %v981 = vpop.f32.mrb[0].mxu0
          %982 = vmatprep.mubr.bf16.mxu0 0
          %983 = vmatmul.mubr.bf16.gmra.mrb[0].mxu0 %v520
          %v984 = vpop.f32.mrb[0].mxu0
          %v985 = vadd.f32 %v441, %v984
          %v986 = vpop.f32.mrb[0].mxu0
          %v987 = vpop.f32.mrb[0].mxu0
          %v988 = vadd.f32 %v441, %v987
          %v989 = vpop.f32.mrb[0].mxu0
          %990 = vmatprep.mubr.bf16.mxu0 0
          %991 = vmatmul.mubr.bf16.gmra.mrb[0].mxu0 %v521
          %v992 = vpop.f32.mrb[0].mxu0
          %v993 = vadd.f32 %v441, %v992
          %v994 = vpop.f32.mrb[0].mxu0
          %v995 = vpop.f32.mrb[0].mxu0
          %v996 = vadd.f32 %v441, %v995
          %v997 = vpop.f32.mrb[0].mxu0
          %998 = vmatprep.mubr.bf16.mxu0 0
          %999 = vmatmul.mubr.bf16.gmra.mrb[0].mxu0 %v522
          %v1000 = vpop.f32.mrb[0].mxu0
          %v1001 = vadd.f32 %v441, %v1000
          %v1002 = vpop.f32.mrb[0].mxu0
          %v1003 = vpop.f32.mrb[0].mxu0
          %v1004 = vadd.f32 %v441, %v1003
          %v1005 = vpop.f32.mrb[0].mxu0
          %1006 = vmatprep.mubr.bf16.mxu0 0
          %1007 = vmatmul.mubr.bf16.gmra.mrb[0].mxu0 %v523
          %v1008 = vpop.f32.mrb[0].mxu0
          %v1009 = vadd.f32 %v441, %v1008
          %v1010 = vpop.f32.mrb[0].mxu0
          %v1011 = vpop.f32.mrb[0].mxu0
          %v1012 = vadd.f32 %v441, %v1011
          %v1013 = vpop.f32.mrb[0].mxu0
          %1014 = vmatprep.mubr.bf16.mxu0 0
          %1015 = vmatmul.mubr.bf16.gmra.mrb[0].mxu0 %v524
          %v1016 = vpop.f32.mrb[0].mxu0
          %v1017 = vadd.f32 %v441, %v1016
          %v1018 = vpop.f32.mrb[0].mxu0
          %v1019 = vpop.f32.mrb[0].mxu0
          %v1020 = vadd.f32 %v441, %v1019
          %v1021 = vpop.f32.mrb[0].mxu0
          %1022 = vdwg.mxu0
          %v1023 = vpack.c.bf16 %v708, %v704
          %v1024 = vpack.c.bf16 %v718, %v714
          %v1025 = vpack.c.bf16 %v728, %v724
          %v1026 = vpack.c.bf16 %v738, %v734
          %v1027 = vpack.c.bf16 %v748, %v744
          %v1028 = vpack.c.bf16 %v758, %v754
          %v1029 = vpack.c.bf16 %v768, %v764
          %v1030 = vpack.c.bf16 %v778, %v774
          %v1031 = vpack.c.bf16 %v788, %v784
          %v1032 = vpack.c.bf16 %v798, %v794
          %v1033 = vpack.c.bf16 %v808, %v804
          %v1034 = vpack.c.bf16 %v818, %v814
          %v1035 = vpack.c.bf16 %v828, %v824
          %v1036 = vpack.c.bf16 %v838, %v834
          %v1037 = vpack.c.bf16 %v848, %v844
          %v1038 = vpack.c.bf16 %v858, %v854
          %1039 = vst [vmem:[#allocation2] sm:$0xff] %v1023
          %1040 = vst [vmem:[#allocation2 + $0x8] sm:$0xff] %v1024
          %1041 = vst [vmem:[#allocation2 + $0x10] sm:$0xff] %v1025
          %1042 = vst [vmem:[#allocation2 + $0x18] sm:$0xff] %v1026
          %1043 = vst [vmem:[#allocation2 + $0x20] sm:$0xff] %v1027
          %1044 = vst [vmem:[#allocation2 + $0x28] sm:$0xff] %v1028
          %1045 = vst [vmem:[#allocation2 + $0x30] sm:$0xff] %v1029
          %1046 = vst [vmem:[#allocation2 + $0x38] sm:$0xff] %v1030
          %1047 = vst [vmem:[#allocation2 + $0x40] sm:$0xff] %v1031
          %1048 = vst [vmem:[#allocation2 + $0x48] sm:$0xff] %v1032
          %1049 = vst [vmem:[#allocation2 + $0x50] sm:$0xff] %v1033
          %1050 = vst [vmem:[#allocation2 + $0x58] sm:$0xff] %v1034
          %1051 = vst [vmem:[#allocation2 + $0x60] sm:$0xff] %v1035
          %1052 = vst [vmem:[#allocation2 + $0x68] sm:$0xff] %v1036
          %1053 = vst [vmem:[#allocation2 + $0x70] sm:$0xff] %v1037
          %1054 = vst [vmem:[#allocation2 + $0x78] sm:$0xff] %v1038
          %1055 = vxpose.xlu0.b32.start [1/16] %v706, 128
          %1056 = vxpose.xlu0.b32.cont [2/16] %v710, 128
          %1057 = vxpose.xlu0.b32.cont [3/16] %v716, 128
          %1058 = vxpose.xlu0.b32.cont [4/16] %v720, 128
          %1059 = vxpose.xlu0.b32.cont [5/16] %v726, 128
          %1060 = vxpose.xlu0.b32.cont [6/16] %v730, 128
          %1061 = vxpose.xlu0.b32.cont [7/16] %v736, 128
          %1062 = vxpose.xlu0.b32.cont [8/16] %v740, 128
          %1063 = vxpose.xlu0.b32.cont [9/16] %v746, 128
          %1064 = vxpose.xlu0.b32.cont [10/16] %v750, 128
          %1065 = vxpose.xlu0.b32.cont [11/16] %v756, 128
          %1066 = vxpose.xlu0.b32.cont [12/16] %v760, 128
          %1067 = vxpose.xlu0.b32.cont [13/16] %v766, 128
          %1068 = vxpose.xlu0.b32.cont [14/16] %v770, 128
          %1069 = vxpose.xlu0.b32.cont [15/16] %v776, 128
          %1070 = vxpose.xlu0.b32.end [16/16] %v780, 128
          %v1071 = vpop.trf.xlu0
          %v1072 = vpop.trf.xlu0
          %v1073 = vpop.trf.xlu0
          %v1074 = vpop.trf.xlu0
          %v1075 = vpop.trf.xlu0
          %v1076 = vpop.trf.xlu0
          %v1077 = vpop.trf.xlu0
          %v1078 = vpop.trf.xlu0
          %v1079 = vpop.trf.xlu0
          %v1080 = vpop.trf.xlu0
          %v1081 = vpop.trf.xlu0
          %v1082 = vpop.trf.xlu0
          %v1083 = vpop.trf.xlu0
          %v1084 = vpop.trf.xlu0
          %v1085 = vpop.trf.xlu0
          %v1086 = vpop.trf.xlu0
          %1087 = vxpose.xlu0.b32.start [1/16] %v786, 128
          %1088 = vxpose.xlu0.b32.cont [2/16] %v790, 128
          %1089 = vxpose.xlu0.b32.cont [3/16] %v796, 128
          %1090 = vxpose.xlu0.b32.cont [4/16] %v800, 128
          %1091 = vxpose.xlu0.b32.cont [5/16] %v806, 128
          %1092 = vxpose.xlu0.b32.cont [6/16] %v810, 128
          %1093 = vxpose.xlu0.b32.cont [7/16] %v816, 128
          %1094 = vxpose.xlu0.b32.cont [8/16] %v820, 128
          %1095 = vxpose.xlu0.b32.cont [9/16] %v826, 128
          %1096 = vxpose.xlu0.b32.cont [10/16] %v830, 128
          %1097 = vxpose.xlu0.b32.cont [11/16] %v836, 128
          %1098 = vxpose.xlu0.b32.cont [12/16] %v840, 128
          %1099 = vxpose.xlu0.b32.cont [13/16] %v846, 128
          %1100 = vxpose.xlu0.b32.cont [14/16] %v850, 128
          %1101 = vxpose.xlu0.b32.cont [15/16] %v856, 128
          %1102 = vxpose.xlu0.b32.end [16/16] %v860, 128
          %v1103 = vpop.trf.xlu0
          %v1104 = vpop.trf.xlu0
          %v1105 = vpop.trf.xlu0
          %v1106 = vpop.trf.xlu0
          %v1107 = vpop.trf.xlu0
          %v1108 = vpop.trf.xlu0
          %v1109 = vpop.trf.xlu0
          %v1110 = vpop.trf.xlu0
          %v1111 = vpop.trf.xlu0
          %v1112 = vpop.trf.xlu0
          %v1113 = vpop.trf.xlu0
          %v1114 = vpop.trf.xlu0
          %v1115 = vpop.trf.xlu0
          %v1116 = vpop.trf.xlu0
          %v1117 = vpop.trf.xlu0
          %v1118 = vpop.trf.xlu0
          %v1119 = vpack.c.bf16 %v1072, %v1071
          %v1120 = vpack.c.bf16 %v1104, %v1103
          %v1121 = vpack.c.bf16 %v1074, %v1073
          %v1122 = vpack.c.bf16 %v1106, %v1105
          %v1123 = vpack.c.bf16 %v1076, %v1075
          %v1124 = vpack.c.bf16 %v1108, %v1107
          %v1125 = vpack.c.bf16 %v1078, %v1077
          %v1126 = vpack.c.bf16 %v1110, %v1109
          %v1127 = vpack.c.bf16 %v1080, %v1079
          %v1128 = vpack.c.bf16 %v1112, %v1111
          %v1129 = vpack.c.bf16 %v1082, %v1081
          %v1130 = vpack.c.bf16 %v1114, %v1113
          %v1131 = vpack.c.bf16 %v1084, %v1083
          %v1132 = vpack.c.bf16 %v1116, %v1115
          %v1133 = vpack.c.bf16 %v1086, %v1085
          %v1134 = vpack.c.bf16 %v1118, %v1117
          %1135 = vst [vmem:[#allocation3] sm:$0xff] %v1119
          %1136 = vst [vmem:[#allocation3 + $0x8] sm:$0xff] %v1120
          %1137 = vst [vmem:[#allocation3 + $0x10] sm:$0xff] %v1121
          %1138 = vst [vmem:[#allocation3 + $0x18] sm:$0xff] %v1122
          %1139 = vst [vmem:[#allocation3 + $0x20] sm:$0xff] %v1123
          %1140 = vst [vmem:[#allocation3 + $0x28] sm:$0xff] %v1124
          %1141 = vst [vmem:[#allocation3 + $0x30] sm:$0xff] %v1125
          %1142 = vst [vmem:[#allocation3 + $0x38] sm:$0xff] %v1126
          %1143 = vst [vmem:[#allocation3 + $0x40] sm:$0xff] %v1127
          %1144 = vst [vmem:[#allocation3 + $0x48] sm:$0xff] %v1128
          %1145 = vst [vmem:[#allocation3 + $0x50] sm:$0xff] %v1129
          %1146 = vst [vmem:[#allocation3 + $0x58] sm:$0xff] %v1130
          %1147 = vst [vmem:[#allocation3 + $0x60] sm:$0xff] %v1131
          %1148 = vst [vmem:[#allocation3 + $0x68] sm:$0xff] %v1132
          %1149 = vst [vmem:[#allocation3 + $0x70] sm:$0xff] %v1133
          %1150 = vst [vmem:[#allocation3 + $0x78] sm:$0xff] %v1134
          %v1151 = vpack.c.bf16 %v900, %v897
          %v1152 = vpack.c.bf16 %v908, %v905
          %v1153 = vpack.c.bf16 %v916, %v913
          %v1154 = vpack.c.bf16 %v924, %v921
          %v1155 = vpack.c.bf16 %v932, %v929
          %v1156 = vpack.c.bf16 %v940, %v937
          %v1157 = vpack.c.bf16 %v948, %v945
          %v1158 = vpack.c.bf16 %v956, %v953
          %v1159 = vpack.c.bf16 %v964, %v961
          %v1160 = vpack.c.bf16 %v972, %v969
          %v1161 = vpack.c.bf16 %v980, %v977
          %v1162 = vpack.c.bf16 %v988, %v985
          %v1163 = vpack.c.bf16 %v996, %v993
          %v1164 = vpack.c.bf16 %v1004, %v1001
          %v1165 = vpack.c.bf16 %v1012, %v1009
          %v1166 = vpack.c.bf16 %v1020, %v1017
          %1167 = vst [vmem:[#allocation4] sm:$0xff] %v1151
          %1168 = vst [vmem:[#allocation4 + $0x8] sm:$0xff] %v1152
          %1169 = vst [vmem:[#allocation4 + $0x10] sm:$0xff] %v1153
          %1170 = vst [vmem:[#allocation4 + $0x18] sm:$0xff] %v1154
          %1171 = vst [vmem:[#allocation4 + $0x20] sm:$0xff] %v1155
          %1172 = vst [vmem:[#allocation4 + $0x28] sm:$0xff] %v1156
          %1173 = vst [vmem:[#allocation4 + $0x30] sm:$0xff] %v1157
          %1174 = vst [vmem:[#allocation4 + $0x38] sm:$0xff] %v1158
          %1175 = vst [vmem:[#allocation4 + $0x40] sm:$0xff] %v1159
          %1176 = vst [vmem:[#allocation4 + $0x48] sm:$0xff] %v1160
          %1177 = vst [vmem:[#allocation4 + $0x50] sm:$0xff] %v1161
          %1178 = vst [vmem:[#allocation4 + $0x58] sm:$0xff] %v1162
          %1179 = vst [vmem:[#allocation4 + $0x60] sm:$0xff] %v1163
          %1180 = vst [vmem:[#allocation4 + $0x68] sm:$0xff] %v1164
          %1181 = vst [vmem:[#allocation4 + $0x70] sm:$0xff] %v1165
          %1182 = vst [vmem:[#allocation4 + $0x78] sm:$0xff] %v1166
        $region64: #{tpu_custom_call.1} parent=43 // pred_fallthru
          _
        %s1183 = smul.u32 %s32, 256
        %s1184 = sshra.s32 %s1183, 4
        %s1185 = sand.u32 %s1183, 15
        %s1186 = smul.addr %s1184, 8
        %s1187 = scalar_lea.vmem [#allocation2], %s1186
        %v1188 = vld [vmem:[%s1187] sm:$0xff]
        %v1189 = vld [vmem:[%s1187 + $0x8] sm:$0xff]
        %v1190 = vld [vmem:[%s1187 + $0x10] sm:$0xff]
        %v1191 = vld [vmem:[%s1187 + $0x18] sm:$0xff]
        %v1192 = vld [vmem:[%s1187 + $0x20] sm:$0xff]
        %v1193 = vld [vmem:[%s1187 + $0x28] sm:$0xff]
        %v1194 = vld [vmem:[%s1187 + $0x30] sm:$0xff]
        %v1195 = vld [vmem:[%s1187 + $0x38] sm:$0xff]
        %v1196 = vld [vmem:[%s1187 + $0x40] sm:$0xff]
        %v1197 = vld [vmem:[%s1187 + $0x48] sm:$0xff]
        %v1198 = vld [vmem:[%s1187 + $0x50] sm:$0xff]
        %v1199 = vld [vmem:[%s1187 + $0x58] sm:$0xff]
        %v1200 = vld [vmem:[%s1187 + $0x60] sm:$0xff]
        %v1201 = vld [vmem:[%s1187 + $0x68] sm:$0xff]
        %v1202 = vld [vmem:[%s1187 + $0x70] sm:$0xff]
        %v1203 = vld [vmem:[%s1187 + $0x78] sm:$0xff]
        %v1204 = vld [vmem:[#allocation3] sm:$0xff]
        %v1205 = vld [vmem:[#allocation3 + $0x8] sm:$0xff]
        %v1206 = vld [vmem:[#allocation3 + $0x10] sm:$0xff]
        %v1207 = vld [vmem:[#allocation3 + $0x18] sm:$0xff]
        %v1208 = vld [vmem:[#allocation3 + $0x20] sm:$0xff]
        %v1209 = vld [vmem:[#allocation3 + $0x28] sm:$0xff]
        %v1210 = vld [vmem:[#allocation3 + $0x30] sm:$0xff]
        %v1211 = vld [vmem:[#allocation3 + $0x38] sm:$0xff]
        %v1212 = vld [vmem:[#allocation3 + $0x40] sm:$0xff]
        %v1213 = vld [vmem:[#allocation3 + $0x48] sm:$0xff]
        %v1214 = vld [vmem:[#allocation3 + $0x50] sm:$0xff]
        %v1215 = vld [vmem:[#allocation3 + $0x58] sm:$0xff]
        %v1216 = vld [vmem:[#allocation3 + $0x60] sm:$0xff]
        %v1217 = vld [vmem:[#allocation3 + $0x68] sm:$0xff]
        %v1218 = vld [vmem:[#allocation3 + $0x70] sm:$0xff]
        %v1219 = vld [vmem:[#allocation3 + $0x78] sm:$0xff]
        %1220 = vmatprep.subr.bf16.mxu0 %v1205
        %1221 = vmatpush1.bf16.msra.mxu0 %v1204
        %1222 = vmatprep.subr.bf16.mxu0 %v1207
        %1223 = vmatpush1.bf16.msra.mxu0 %v1206
        %1224 = vmatprep.subr.bf16.mxu0 %v1209
        %1225 = vmatpush1.bf16.msra.mxu0 %v1208
        %1226 = vmatprep.subr.bf16.mxu0 %v1211
        %1227 = vmatpush1.bf16.msra.mxu0 %v1210
        %1228 = vmatprep.subr.bf16.mxu0 %v1213
        %1229 = vmatpush1.bf16.msra.mxu0 %v1212
        %1230 = vmatprep.subr.bf16.mxu0 %v1215
        %1231 = vmatpush1.bf16.msra.mxu0 %v1214
        %1232 = vmatprep.subr.bf16.mxu0 %v1217
        %1233 = vmatpush1.bf16.msra.mxu0 %v1216
        %1234 = vmatprep.subr.bf16.mxu0 %v1219
        %1235 = vmatpush1.bf16.msra.mxu0 %v1218
        %1236 = vmatprep.subr.bf16.mxu0 0
        %1237 = vmatpush1.bf16.msra.mxu0 0
        %1238 = vmatprep.subr.bf16.mxu0 0
        %1239 = vmatpush1.bf16.msra.mxu0 0
        %1240 = vmatprep.subr.bf16.mxu0 0
        %1241 = vmatpush1.bf16.msra.mxu0 0
        %1242 = vmatprep.subr.bf16.mxu0 0
        %1243 = vmatpush1.bf16.msra.mxu0 0
        %1244 = vmatprep.subr.bf16.mxu0 0
        %1245 = vmatpush1.bf16.msra.mxu0 0
        %1246 = vmatprep.subr.bf16.mxu0 0
        %1247 = vmatpush1.bf16.msra.mxu0 0
        %1248 = vmatprep.subr.bf16.mxu0 0
        %1249 = vmatpush1.bf16.msra.mxu0 0
        %1250 = vmatprep.subr.bf16.mxu0 0
        %1251 = vmatpush1.bf16.msra.mxu0 0
        %1252 = vmatprep.mubr.bf16.mxu0 0
        %1253 = vmatmul.mubr.bf16.gmra.mrb[0].mxu0 %v1188
        %v1254 = vpop.f32.mrb[0].mxu0
        %v1255 = vadd.f32 0.0, %v1254
        %v1256 = vpop.f32.mrb[0].mxu0
        %v1257 = vadd.f32 0.0, %v1256
        %v1258 = vpop.f32.mrb[0].mxu0
        %v1259 = vadd.f32 0.0, %v1258
        %v1260 = vpop.f32.mrb[0].mxu0
        %v1261 = vadd.f32 0.0, %v1260
        %1262 = vmatprep.mubr.bf16.mxu0 0
        %1263 = vmatmul.mubr.bf16.gmra.mrb[0].mxu0 %v1189
        %v1264 = vpop.f32.mrb[0].mxu0
        %v1265 = vadd.f32 0.0, %v1264
        %v1266 = vpop.f32.mrb[0].mxu0
        %v1267 = vadd.f32 0.0, %v1266
        %v1268 = vpop.f32.mrb[0].mxu0
        %v1269 = vadd.f32 0.0, %v1268
        %v1270 = vpop.f32.mrb[0].mxu0
        %v1271 = vadd.f32 0.0, %v1270
        %1272 = vmatprep.mubr.bf16.mxu0 0
        %1273 = vmatmul.mubr.bf16.gmra.mrb[0].mxu0 %v1190
        %v1274 = vpop.f32.mrb[0].mxu0
        %v1275 = vadd.f32 0.0, %v1274
        %v1276 = vpop.f32.mrb[0].mxu0
        %v1277 = vadd.f32 0.0, %v1276
        %v1278 = vpop.f32.mrb[0].mxu0
        %v1279 = vadd.f32 0.0, %v1278
        %v1280 = vpop.f32.mrb[0].mxu0
        %v1281 = vadd.f32 0.0, %v1280
        %1282 = vmatprep.mubr.bf16.mxu0 0
        %1283 = vmatmul.mubr.bf16.gmra.mrb[0].mxu0 %v1191
        %v1284 = vpop.f32.mrb[0].mxu0
        %v1285 = vadd.f32 0.0, %v1284
        %v1286 = vpop.f32.mrb[0].mxu0
        %v1287 = vadd.f32 0.0, %v1286
        %v1288 = vpop.f32.mrb[0].mxu0
        %v1289 = vadd.f32 0.0, %v1288
        %v1290 = vpop.f32.mrb[0].mxu0
        %v1291 = vadd.f32 0.0, %v1290
        %1292 = vmatprep.mubr.bf16.mxu0 0
        %1293 = vmatmul.mubr.bf16.gmra.mrb[0].mxu0 %v1192
        %v1294 = vpop.f32.mrb[0].mxu0
        %v1295 = vadd.f32 0.0, %v1294
        %v1296 = vpop.f32.mrb[0].mxu0
        %v1297 = vadd.f32 0.0, %v1296
        %v1298 = vpop.f32.mrb[0].mxu0
        %v1299 = vadd.f32 0.0, %v1298
        %v1300 = vpop.f32.mrb[0].mxu0
        %v1301 = vadd.f32 0.0, %v1300
        %1302 = vmatprep.mubr.bf16.mxu0 0
        %1303 = vmatmul.mubr.bf16.gmra.mrb[0].mxu0 %v1193
        %v1304 = vpop.f32.mrb[0].mxu0
        %v1305 = vadd.f32 0.0, %v1304
        %v1306 = vpop.f32.mrb[0].mxu0
        %v1307 = vadd.f32 0.0, %v1306
        %v1308 = vpop.f32.mrb[0].mxu0
        %v1309 = vadd.f32 0.0, %v1308
        %v1310 = vpop.f32.mrb[0].mxu0
        %v1311 = vadd.f32 0.0, %v1310
        %1312 = vmatprep.mubr.bf16.mxu0 0
        %1313 = vmatmul.mubr.bf16.gmra.mrb[0].mxu0 %v1194
        %v1314 = vpop.f32.mrb[0].mxu0
        %v1315 = vadd.f32 0.0, %v1314
        %v1316 = vpop.f32.mrb[0].mxu0
        %v1317 = vadd.f32 0.0, %v1316
        %v1318 = vpop.f32.mrb[0].mxu0
        %v1319 = vadd.f32 0.0, %v1318
        %v1320 = vpop.f32.mrb[0].mxu0
        %v1321 = vadd.f32 0.0, %v1320
        %1322 = vmatprep.mubr.bf16.mxu0 0
        %1323 = vmatmul.mubr.bf16.gmra.mrb[0].mxu0 %v1195
        %v1324 = vpop.f32.mrb[0].mxu0
        %v1325 = vadd.f32 0.0, %v1324
        %v1326 = vpop.f32.mrb[0].mxu0
        %v1327 = vadd.f32 0.0, %v1326
        %v1328 = vpop.f32.mrb[0].mxu0
        %v1329 = vadd.f32 0.0, %v1328
        %v1330 = vpop.f32.mrb[0].mxu0
        %v1331 = vadd.f32 0.0, %v1330
        %1332 = vmatprep.mubr.bf16.mxu0 0
        %1333 = vmatmul.mubr.bf16.gmra.mrb[0].mxu0 %v1196
        %v1334 = vpop.f32.mrb[0].mxu0
        %v1335 = vadd.f32 0.0, %v1334
        %v1336 = vpop.f32.mrb[0].mxu0
        %v1337 = vadd.f32 0.0, %v1336
        %v1338 = vpop.f32.mrb[0].mxu0
        %v1339 = vadd.f32 0.0, %v1338
        %v1340 = vpop.f32.mrb[0].mxu0
        %v1341 = vadd.f32 0.0, %v1340
        %1342 = vmatprep.mubr.bf16.mxu0 0
        %1343 = vmatmul.mubr.bf16.gmra.mrb[0].mxu0 %v1197
        %v1344 = vpop.f32.mrb[0].mxu0
        %v1345 = vadd.f32 0.0, %v1344
        %v1346 = vpop.f32.mrb[0].mxu0
        %v1347 = vadd.f32 0.0, %v1346
        %v1348 = vpop.f32.mrb[0].mxu0
        %v1349 = vadd.f32 0.0, %v1348
        %v1350 = vpop.f32.mrb[0].mxu0
        %v1351 = vadd.f32 0.0, %v1350
        %1352 = vmatprep.mubr.bf16.mxu0 0
        %1353 = vmatmul.mubr.bf16.gmra.mrb[0].mxu0 %v1198
        %v1354 = vpop.f32.mrb[0].mxu0
        %v1355 = vadd.f32 0.0, %v1354
        %v1356 = vpop.f32.mrb[0].mxu0
        %v1357 = vadd.f32 0.0, %v1356
        %v1358 = vpop.f32.mrb[0].mxu0
        %v1359 = vadd.f32 0.0, %v1358
        %v1360 = vpop.f32.mrb[0].mxu0
        %v1361 = vadd.f32 0.0, %v1360
        %1362 = vmatprep.mubr.bf16.mxu0 0
        %1363 = vmatmul.mubr.bf16.gmra.mrb[0].mxu0 %v1199
        %v1364 = vpop.f32.mrb[0].mxu0
        %v1365 = vadd.f32 0.0, %v1364
        %v1366 = vpop.f32.mrb[0].mxu0
        %v1367 = vadd.f32 0.0, %v1366
        %v1368 = vpop.f32.mrb[0].mxu0
        %v1369 = vadd.f32 0.0, %v1368
        %v1370 = vpop.f32.mrb[0].mxu0
        %v1371 = vadd.f32 0.0, %v1370
        %1372 = vmatprep.mubr.bf16.mxu0 0
        %1373 = vmatmul.mubr.bf16.gmra.mrb[0].mxu0 %v1200
        %v1374 = vpop.f32.mrb[0].mxu0
        %v1375 = vadd.f32 0.0, %v1374
        %v1376 = vpop.f32.mrb[0].mxu0
        %v1377 = vadd.f32 0.0, %v1376
        %v1378 = vpop.f32.mrb[0].mxu0
        %v1379 = vadd.f32 0.0, %v1378
        %v1380 = vpop.f32.mrb[0].mxu0
        %v1381 = vadd.f32 0.0, %v1380
        %1382 = vmatprep.mubr.bf16.mxu0 0
        %1383 = vmatmul.mubr.bf16.gmra.mrb[0].mxu0 %v1201
        %v1384 = vpop.f32.mrb[0].mxu0
        %v1385 = vadd.f32 0.0, %v1384
        %v1386 = vpop.f32.mrb[0].mxu0
        %v1387 = vadd.f32 0.0, %v1386
        %v1388 = vpop.f32.mrb[0].mxu0
        %v1389 = vadd.f32 0.0, %v1388
        %v1390 = vpop.f32.mrb[0].mxu0
        %v1391 = vadd.f32 0.0, %v1390
        %1392 = vmatprep.mubr.bf16.mxu0 0
        %1393 = vmatmul.mubr.bf16.gmra.mrb[0].mxu0 %v1202
        %v1394 = vpop.f32.mrb[0].mxu0
        %v1395 = vadd.f32 0.0, %v1394
        %v1396 = vpop.f32.mrb[0].mxu0
        %v1397 = vadd.f32 0.0, %v1396
        %v1398 = vpop.f32.mrb[0].mxu0
        %v1399 = vadd.f32 0.0, %v1398
        %v1400 = vpop.f32.mrb[0].mxu0
        %v1401 = vadd.f32 0.0, %v1400
        %1402 = vmatprep.mubr.bf16.mxu0 0
        %1403 = vmatmul.mubr.bf16.gmra.mrb[0].mxu0 %v1203
        %v1404 = vpop.f32.mrb[0].mxu0
        %v1405 = vadd.f32 0.0, %v1404
        %v1406 = vpop.f32.mrb[0].mxu0
        %v1407 = vadd.f32 0.0, %v1406
        %v1408 = vpop.f32.mrb[0].mxu0
        %v1409 = vadd.f32 0.0, %v1408
        %v1410 = vpop.f32.mrb[0].mxu0
        %v1411 = vadd.f32 0.0, %v1410
        %1412 = vdwg.mxu0
        %v1413 = vmax.f32 %v1255, %v1257
        %1414 = vmax.xlane.f32.xlu0 %v1413
        %v1415 = vpop.xlane.xlu0 %1414
        %v1416 = vmax.f32 %v1259, %v1261
        %1417 = vmax.xlane.f32.xlu0 %v1416
        %v1418 = vpop.xlane.xlu0 %1417
        %v1419 = vmax.f32 %v1265, %v1267
        %1420 = vmax.xlane.f32.xlu0 %v1419
        %v1421 = vpop.xlane.xlu0 %1420
        %v1422 = vmax.f32 %v1269, %v1271
        %1423 = vmax.xlane.f32.xlu0 %v1422
        %v1424 = vpop.xlane.xlu0 %1423
        %v1425 = vmax.f32 %v1275, %v1277
        %1426 = vmax.xlane.f32.xlu0 %v1425
        %v1427 = vpop.xlane.xlu0 %1426
        %v1428 = vmax.f32 %v1279, %v1281
        %1429 = vmax.xlane.f32.xlu0 %v1428
        %v1430 = vpop.xlane.xlu0 %1429
        %v1431 = vmax.f32 %v1285, %v1287
        %1432 = vmax.xlane.f32.xlu0 %v1431
        %v1433 = vpop.xlane.xlu0 %1432
        %v1434 = vmax.f32 %v1289, %v1291
        %1435 = vmax.xlane.f32.xlu0 %v1434
        %v1436 = vpop.xlane.xlu0 %1435
        %v1437 = vmax.f32 %v1295, %v1297
        %1438 = vmax.xlane.f32.xlu0 %v1437
        %v1439 = vpop.xlane.xlu0 %1438
        %v1440 = vmax.f32 %v1299, %v1301
        %1441 = vmax.xlane.f32.xlu0 %v1440
        %v1442 = vpop.xlane.xlu0 %1441
        %v1443 = vmax.f32 %v1305, %v1307
        %1444 = vmax.xlane.f32.xlu0 %v1443
        %v1445 = vpop.xlane.xlu0 %1444
        %v1446 = vmax.f32 %v1309, %v1311
        %1447 = vmax.xlane.f32.xlu0 %v1446
        %v1448 = vpop.xlane.xlu0 %1447
        %v1449 = vmax.f32 %v1315, %v1317
        %1450 = vmax.xlane.f32.xlu0 %v1449
        %v1451 = vpop.xlane.xlu0 %1450
        %v1452 = vmax.f32 %v1319, %v1321
        %1453 = vmax.xlane.f32.xlu0 %v1452
        %v1454 = vpop.xlane.xlu0 %1453
        %v1455 = vmax.f32 %v1325, %v1327
        %1456 = vmax.xlane.f32.xlu0 %v1455
        %v1457 = vpop.xlane.xlu0 %1456
        %v1458 = vmax.f32 %v1329, %v1331
        %1459 = vmax.xlane.f32.xlu0 %v1458
        %v1460 = vpop.xlane.xlu0 %1459
        %v1461 = vmax.f32 %v1335, %v1337
        %1462 = vmax.xlane.f32.xlu0 %v1461
        %v1463 = vpop.xlane.xlu0 %1462
        %v1464 = vmax.f32 %v1339, %v1341
        %1465 = vmax.xlane.f32.xlu0 %v1464
        %v1466 = vpop.xlane.xlu0 %1465
        %v1467 = vmax.f32 %v1345, %v1347
        %1468 = vmax.xlane.f32.xlu0 %v1467
        %v1469 = vpop.xlane.xlu0 %1468
        %v1470 = vmax.f32 %v1349, %v1351
        %1471 = vmax.xlane.f32.xlu0 %v1470
        %v1472 = vpop.xlane.xlu0 %1471
        %v1473 = vmax.f32 %v1355, %v1357
        %1474 = vmax.xlane.f32.xlu0 %v1473
        %v1475 = vpop.xlane.xlu0 %1474
        %v1476 = vmax.f32 %v1359, %v1361
        %1477 = vmax.xlane.f32.xlu0 %v1476
        %v1478 = vpop.xlane.xlu0 %1477
        %v1479 = vmax.f32 %v1365, %v1367
        %1480 = vmax.xlane.f32.xlu0 %v1479
        %v1481 = vpop.xlane.xlu0 %1480
        %v1482 = vmax.f32 %v1369, %v1371
        %1483 = vmax.xlane.f32.xlu0 %v1482
        %v1484 = vpop.xlane.xlu0 %1483
        %v1485 = vmax.f32 %v1375, %v1377
        %1486 = vmax.xlane.f32.xlu0 %v1485
        %v1487 = vpop.xlane.xlu0 %1486
        %v1488 = vmax.f32 %v1379, %v1381
        %1489 = vmax.xlane.f32.xlu0 %v1488
        %v1490 = vpop.xlane.xlu0 %1489
        %v1491 = vmax.f32 %v1385, %v1387
        %1492 = vmax.xlane.f32.xlu0 %v1491
        %v1493 = vpop.xlane.xlu0 %1492
        %v1494 = vmax.f32 %v1389, %v1391
        %1495 = vmax.xlane.f32.xlu0 %v1494
        %v1496 = vpop.xlane.xlu0 %1495
        %v1497 = vmax.f32 %v1395, %v1397
        %1498 = vmax.xlane.f32.xlu0 %v1497
        %v1499 = vpop.xlane.xlu0 %1498
        %v1500 = vmax.f32 %v1399, %v1401
        %1501 = vmax.xlane.f32.xlu0 %v1500
        %v1502 = vpop.xlane.xlu0 %1501
        %v1503 = vmax.f32 %v1405, %v1407
        %1504 = vmax.xlane.f32.xlu0 %v1503
        %v1505 = vpop.xlane.xlu0 %1504
        %v1506 = vmax.f32 %v1409, %v1411
        %1507 = vmax.xlane.f32.xlu0 %v1506
        %v1508 = vpop.xlane.xlu0 %1507
        %v1509 = vsub.f32 %v1255, %v1415
        %v1510 = vsub.f32 %v1257, %v1415
        %v1511 = vsub.f32 %v1259, %v1418
        %v1512 = vsub.f32 %v1261, %v1418
        %v1513 = vsub.f32 %v1265, %v1421
        %v1514 = vsub.f32 %v1267, %v1421
        %v1515 = vsub.f32 %v1269, %v1424
        %v1516 = vsub.f32 %v1271, %v1424
        %v1517 = vsub.f32 %v1275, %v1427
        %v1518 = vsub.f32 %v1277, %v1427
        %v1519 = vsub.f32 %v1279, %v1430
        %v1520 = vsub.f32 %v1281, %v1430
        %v1521 = vsub.f32 %v1285, %v1433
        %v1522 = vsub.f32 %v1287, %v1433
        %v1523 = vsub.f32 %v1289, %v1436
        %v1524 = vsub.f32 %v1291, %v1436
        %v1525 = vsub.f32 %v1295, %v1439
        %v1526 = vsub.f32 %v1297, %v1439
        %v1527 = vsub.f32 %v1299, %v1442
        %v1528 = vsub.f32 %v1301, %v1442
        %v1529 = vsub.f32 %v1305, %v1445
        %v1530 = vsub.f32 %v1307, %v1445
        %v1531 = vsub.f32 %v1309, %v1448
        %v1532 = vsub.f32 %v1311, %v1448
        %v1533 = vsub.f32 %v1315, %v1451
        %v1534 = vsub.f32 %v1317, %v1451
        %v1535 = vsub.f32 %v1319, %v1454
        %v1536 = vsub.f32 %v1321, %v1454
        %v1537 = vsub.f32 %v1325, %v1457
        %v1538 = vsub.f32 %v1327, %v1457
        %v1539 = vsub.f32 %v1329, %v1460
        %v1540 = vsub.f32 %v1331, %v1460
        %v1541 = vsub.f32 %v1335, %v1463
        %v1542 = vsub.f32 %v1337, %v1463
        %v1543 = vsub.f32 %v1339, %v1466
        %v1544 = vsub.f32 %v1341, %v1466
        %v1545 = vsub.f32 %v1345, %v1469
        %v1546 = vsub.f32 %v1347, %v1469
        %v1547 = vsub.f32 %v1349, %v1472
        %v1548 = vsub.f32 %v1351, %v1472
        %v1549 = vsub.f32 %v1355, %v1475
        %v1550 = vsub.f32 %v1357, %v1475
        %v1551 = vsub.f32 %v1359, %v1478
        %v1552 = vsub.f32 %v1361, %v1478
        %v1553 = vsub.f32 %v1365, %v1481
        %v1554 = vsub.f32 %v1367, %v1481
        %v1555 = vsub.f32 %v1369, %v1484
        %v1556 = vsub.f32 %v1371, %v1484
        %v1557 = vsub.f32 %v1375, %v1487
        %v1558 = vsub.f32 %v1377, %v1487
        %v1559 = vsub.f32 %v1379, %v1490
        %v1560 = vsub.f32 %v1381, %v1490
        %v1561 = vsub.f32 %v1385, %v1493
        %v1562 = vsub.f32 %v1387, %v1493
        %v1563 = vsub.f32 %v1389, %v1496
        %v1564 = vsub.f32 %v1391, %v1496
        %v1565 = vsub.f32 %v1395, %v1499
        %v1566 = vsub.f32 %v1397, %v1499
        %v1567 = vsub.f32 %v1399, %v1502
        %v1568 = vsub.f32 %v1401, %v1502
        %v1569 = vsub.f32 %v1405, %v1505
        %v1570 = vsub.f32 %v1407, %v1505
        %v1571 = vsub.f32 %v1409, %v1508
        %v1572 = vsub.f32 %v1411, %v1508
        %v1573 = vmul.f32 %v1509, 1.442695
        %v1574 = vpow.pop %v1573
        %v1575 = vmul.f32 %v1510, 1.442695
        %v1576 = vpow.pop %v1575
        %v1577 = vmul.f32 %v1511, 1.442695
        %v1578 = vpow.pop %v1577
        %v1579 = vmul.f32 %v1512, 1.442695
        %v1580 = vpow.pop %v1579
        %v1581 = vmul.f32 %v1513, 1.442695
        %v1582 = vpow.pop %v1581
        %v1583 = vmul.f32 %v1514, 1.442695
        %v1584 = vpow.pop %v1583
        %v1585 = vmul.f32 %v1515, 1.442695
        %v1586 = vpow.pop %v1585
        %v1587 = vmul.f32 %v1516, 1.442695
        %v1588 = vpow.pop %v1587
        %v1589 = vmul.f32 %v1517, 1.442695
        %v1590 = vpow.pop %v1589
        %v1591 = vmul.f32 %v1518, 1.442695
        %v1592 = vpow.pop %v1591
        %v1593 = vmul.f32 %v1519, 1.442695
        %v1594 = vpow.pop %v1593
        %v1595 = vmul.f32 %v1520, 1.442695
        %v1596 = vpow.pop %v1595
        %v1597 = vmul.f32 %v1521, 1.442695
        %v1598 = vpow.pop %v1597
        %v1599 = vmul.f32 %v1522, 1.442695
        %v1600 = vpow.pop %v1599
        %v1601 = vmul.f32 %v1523, 1.442695
        %v1602 = vpow.pop %v1601
        %v1603 = vmul.f32 %v1524, 1.442695
        %v1604 = vpow.pop %v1603
        %v1605 = vmul.f32 %v1525, 1.442695
        %v1606 = vpow.pop %v1605
        %v1607 = vmul.f32 %v1526, 1.442695
        %v1608 = vpow.pop %v1607
        %v1609 = vmul.f32 %v1527, 1.442695
        %v1610 = vpow.pop %v1609
        %v1611 = vmul.f32 %v1528, 1.442695
        %v1612 = vpow.pop %v1611
        %v1613 = vmul.f32 %v1529, 1.442695
        %v1614 = vpow.pop %v1613
        %v1615 = vmul.f32 %v1530, 1.442695
        %v1616 = vpow.pop %v1615
        %v1617 = vmul.f32 %v1531, 1.442695
        %v1618 = vpow.pop %v1617
        %v1619 = vmul.f32 %v1532, 1.442695
        %v1620 = vpow.pop %v1619
        %v1621 = vmul.f32 %v1533, 1.442695
        %v1622 = vpow.pop %v1621
        %v1623 = vmul.f32 %v1534, 1.442695
        %v1624 = vpow.pop %v1623
        %v1625 = vmul.f32 %v1535, 1.442695
        %v1626 = vpow.pop %v1625
        %v1627 = vmul.f32 %v1536, 1.442695
        %v1628 = vpow.pop %v1627
        %v1629 = vmul.f32 %v1537, 1.442695
        %v1630 = vpow.pop %v1629
        %v1631 = vmul.f32 %v1538, 1.442695
        %v1632 = vpow.pop %v1631
        %v1633 = vmul.f32 %v1539, 1.442695
        %v1634 = vpow.pop %v1633
        %v1635 = vmul.f32 %v1540, 1.442695
        %v1636 = vpow.pop %v1635
        %v1637 = vmul.f32 %v1541, 1.442695
        %v1638 = vpow.pop %v1637
        %v1639 = vmul.f32 %v1542, 1.442695
        %v1640 = vpow.pop %v1639
        %v1641 = vmul.f32 %v1543, 1.442695
        %v1642 = vpow.pop %v1641
        %v1643 = vmul.f32 %v1544, 1.442695
        %v1644 = vpow.pop %v1643
        %v1645 = vmul.f32 %v1545, 1.442695
        %v1646 = vpow.pop %v1645
        %v1647 = vmul.f32 %v1546, 1.442695
        %v1648 = vpow.pop %v1647
        %v1649 = vmul.f32 %v1547, 1.442695
        %v1650 = vpow.pop %v1649
        %v1651 = vmul.f32 %v1548, 1.442695
        %v1652 = vpow.pop %v1651
        %v1653 = vmul.f32 %v1549, 1.442695
        %v1654 = vpow.pop %v1653
        %v1655 = vmul.f32 %v1550, 1.442695
        %v1656 = vpow.pop %v1655
        %v1657 = vmul.f32 %v1551, 1.442695
        %v1658 = vpow.pop %v1657
        %v1659 = vmul.f32 %v1552, 1.442695
        %v1660 = vpow.pop %v1659
        %v1661 = vmul.f32 %v1553, 1.442695
        %v1662 = vpow.pop %v1661
        %v1663 = vmul.f32 %v1554, 1.442695
        %v1664 = vpow.pop %v1663
        %v1665 = vmul.f32 %v1555, 1.442695
        %v1666 = vpow.pop %v1665
        %v1667 = vmul.f32 %v1556, 1.442695
        %v1668 = vpow.pop %v1667
        %v1669 = vmul.f32 %v1557, 1.442695
        %v1670 = vpow.pop %v1669
        %v1671 = vmul.f32 %v1558, 1.442695
        %v1672 = vpow.pop %v1671
        %v1673 = vmul.f32 %v1559, 1.442695
        %v1674 = vpow.pop %v1673
        %v1675 = vmul.f32 %v1560, 1.442695
        %v1676 = vpow.pop %v1675
        %v1677 = vmul.f32 %v1561, 1.442695
        %v1678 = vpow.pop %v1677
        %v1679 = vmul.f32 %v1562, 1.442695
        %v1680 = vpow.pop %v1679
        %v1681 = vmul.f32 %v1563, 1.442695
        %v1682 = vpow.pop %v1681
        %v1683 = vmul.f32 %v1564, 1.442695
        %v1684 = vpow.pop %v1683
        %v1685 = vmul.f32 %v1565, 1.442695
        %v1686 = vpow.pop %v1685
        %v1687 = vmul.f32 %v1566, 1.442695
        %v1688 = vpow.pop %v1687
        %v1689 = vmul.f32 %v1567, 1.442695
        %v1690 = vpow.pop %v1689
        %v1691 = vmul.f32 %v1568, 1.442695
        %v1692 = vpow.pop %v1691
        %v1693 = vmul.f32 %v1569, 1.442695
        %v1694 = vpow.pop %v1693
        %v1695 = vmul.f32 %v1570, 1.442695
        %v1696 = vpow.pop %v1695
        %v1697 = vmul.f32 %v1571, 1.442695
        %v1698 = vpow.pop %v1697
        %v1699 = vmul.f32 %v1572, 1.442695
        %v1700 = vpow.pop %v1699
        %v1701 = vadd.f32 %v1574, %v1576
        %1702 = vadd.xlane.f32.xlu0 %v1701
        %v1703 = vpop.xlane.xlu0 %1702
        %v1704 = vadd.f32 %v1578, %v1580
        %1705 = vadd.xlane.f32.xlu0 %v1704
        %v1706 = vpop.xlane.xlu0 %1705
        %v1707 = vadd.f32 %v1582, %v1584
        %1708 = vadd.xlane.f32.xlu0 %v1707
        %v1709 = vpop.xlane.xlu0 %1708
        %v1710 = vadd.f32 %v1586, %v1588
        %1711 = vadd.xlane.f32.xlu0 %v1710
        %v1712 = vpop.xlane.xlu0 %1711
        %v1713 = vadd.f32 %v1590, %v1592
        %1714 = vadd.xlane.f32.xlu0 %v1713
        %v1715 = vpop.xlane.xlu0 %1714
        %v1716 = vadd.f32 %v1594, %v1596
        %1717 = vadd.xlane.f32.xlu0 %v1716
        %v1718 = vpop.xlane.xlu0 %1717
        %v1719 = vadd.f32 %v1598, %v1600
        %1720 = vadd.xlane.f32.xlu0 %v1719
        %v1721 = vpop.xlane.xlu0 %1720
        %v1722 = vadd.f32 %v1602, %v1604
        %1723 = vadd.xlane.f32.xlu0 %v1722
        %v1724 = vpop.xlane.xlu0 %1723
        %v1725 = vadd.f32 %v1606, %v1608
        %1726 = vadd.xlane.f32.xlu0 %v1725
        %v1727 = vpop.xlane.xlu0 %1726
        %v1728 = vadd.f32 %v1610, %v1612
        %1729 = vadd.xlane.f32.xlu0 %v1728
        %v1730 = vpop.xlane.xlu0 %1729
        %v1731 = vadd.f32 %v1614, %v1616
        %1732 = vadd.xlane.f32.xlu0 %v1731
        %v1733 = vpop.xlane.xlu0 %1732
        %v1734 = vadd.f32 %v1618, %v1620
        %1735 = vadd.xlane.f32.xlu0 %v1734
        %v1736 = vpop.xlane.xlu0 %1735
        %v1737 = vadd.f32 %v1622, %v1624
        %1738 = vadd.xlane.f32.xlu0 %v1737
        %v1739 = vpop.xlane.xlu0 %1738
        %v1740 = vadd.f32 %v1626, %v1628
        %1741 = vadd.xlane.f32.xlu0 %v1740
        %v1742 = vpop.xlane.xlu0 %1741
        %v1743 = vadd.f32 %v1630, %v1632
        %1744 = vadd.xlane.f32.xlu0 %v1743
        %v1745 = vpop.xlane.xlu0 %1744
        %v1746 = vadd.f32 %v1634, %v1636
        %1747 = vadd.xlane.f32.xlu0 %v1746
        %v1748 = vpop.xlane.xlu0 %1747
        %v1749 = vadd.f32 %v1638, %v1640
        %1750 = vadd.xlane.f32.xlu0 %v1749
        %v1751 = vpop.xlane.xlu0 %1750
        %v1752 = vadd.f32 %v1642, %v1644
        %1753 = vadd.xlane.f32.xlu0 %v1752
        %v1754 = vpop.xlane.xlu0 %1753
        %v1755 = vadd.f32 %v1646, %v1648
        %1756 = vadd.xlane.f32.xlu0 %v1755
        %v1757 = vpop.xlane.xlu0 %1756
        %v1758 = vadd.f32 %v1650, %v1652
        %1759 = vadd.xlane.f32.xlu0 %v1758
        %v1760 = vpop.xlane.xlu0 %1759
        %v1761 = vadd.f32 %v1654, %v1656
        %1762 = vadd.xlane.f32.xlu0 %v1761
        %v1763 = vpop.xlane.xlu0 %1762
        %v1764 = vadd.f32 %v1658, %v1660
        %1765 = vadd.xlane.f32.xlu0 %v1764
        %v1766 = vpop.xlane.xlu0 %1765
        %v1767 = vadd.f32 %v1662, %v1664
        %1768 = vadd.xlane.f32.xlu0 %v1767
        %v1769 = vpop.xlane.xlu0 %1768
        %v1770 = vadd.f32 %v1666, %v1668
        %1771 = vadd.xlane.f32.xlu0 %v1770
        %v1772 = vpop.xlane.xlu0 %1771
        %v1773 = vadd.f32 %v1670, %v1672
        %1774 = vadd.xlane.f32.xlu0 %v1773
        %v1775 = vpop.xlane.xlu0 %1774
        %v1776 = vadd.f32 %v1674, %v1676
        %1777 = vadd.xlane.f32.xlu0 %v1776
        %v1778 = vpop.xlane.xlu0 %1777
        %v1779 = vadd.f32 %v1678, %v1680
        %1780 = vadd.xlane.f32.xlu0 %v1779
        %v1781 = vpop.xlane.xlu0 %1780
        %v1782 = vadd.f32 %v1682, %v1684
        %1783 = vadd.xlane.f32.xlu0 %v1782
        %v1784 = vpop.xlane.xlu0 %1783
        %v1785 = vadd.f32 %v1686, %v1688
        %1786 = vadd.xlane.f32.xlu0 %v1785
        %v1787 = vpop.xlane.xlu0 %1786
        %v1788 = vadd.f32 %v1690, %v1692
        %1789 = vadd.xlane.f32.xlu0 %v1788
        %v1790 = vpop.xlane.xlu0 %1789
        %v1791 = vadd.f32 %v1694, %v1696
        %1792 = vadd.xlane.f32.xlu0 %v1791
        %v1793 = vpop.xlane.xlu0 %1792
        %v1794 = vadd.f32 %v1698, %v1700
        %1795 = vadd.xlane.f32.xlu0 %v1794
        %v1796 = vpop.xlane.xlu0 %1795
        %v1797 = vrcp.pop %v1703
        %v1798 = vrcp.pop %v1706
        %v1799 = vrcp.pop %v1709
        %v1800 = vrcp.pop %v1712
        %v1801 = vrcp.pop %v1715
        %v1802 = vrcp.pop %v1718
        %v1803 = vrcp.pop %v1721
        %v1804 = vrcp.pop %v1724
        %v1805 = vrcp.pop %v1727
        %v1806 = vrcp.pop %v1730
        %v1807 = vrcp.pop %v1733
        %v1808 = vrcp.pop %v1736
        %v1809 = vrcp.pop %v1739
        %v1810 = vrcp.pop %v1742
        %v1811 = vrcp.pop %v1745
        %v1812 = vrcp.pop %v1748
        %v1813 = vrcp.pop %v1751
        %v1814 = vrcp.pop %v1754
        %v1815 = vrcp.pop %v1757
        %v1816 = vrcp.pop %v1760
        %v1817 = vrcp.pop %v1763
        %v1818 = vrcp.pop %v1766
        %v1819 = vrcp.pop %v1769
        %v1820 = vrcp.pop %v1772
        %v1821 = vrcp.pop %v1775
        %v1822 = vrcp.pop %v1778
        %v1823 = vrcp.pop %v1781
        %v1824 = vrcp.pop %v1784
        %v1825 = vrcp.pop %v1787
        %v1826 = vrcp.pop %v1790
        %v1827 = vrcp.pop %v1793
        %v1828 = vrcp.pop %v1796
        %v1829 = vmul.f32 %v1574, %v1797
        %v1830 = vmul.f32 %v1576, %v1797
        %v1831 = vmul.f32 %v1578, %v1798
        %v1832 = vmul.f32 %v1580, %v1798
        %v1833 = vmul.f32 %v1582, %v1799
        %v1834 = vmul.f32 %v1584, %v1799
        %v1835 = vmul.f32 %v1586, %v1800
        %v1836 = vmul.f32 %v1588, %v1800
        %v1837 = vmul.f32 %v1590, %v1801
        %v1838 = vmul.f32 %v1592, %v1801
        %v1839 = vmul.f32 %v1594, %v1802
        %v1840 = vmul.f32 %v1596, %v1802
        %v1841 = vmul.f32 %v1598, %v1803
        %v1842 = vmul.f32 %v1600, %v1803
        %v1843 = vmul.f32 %v1602, %v1804
        %v1844 = vmul.f32 %v1604, %v1804
        %v1845 = vmul.f32 %v1606, %v1805
        %v1846 = vmul.f32 %v1608, %v1805
        %v1847 = vmul.f32 %v1610, %v1806
        %v1848 = vmul.f32 %v1612, %v1806
        %v1849 = vmul.f32 %v1614, %v1807
        %v1850 = vmul.f32 %v1616, %v1807
        %v1851 = vmul.f32 %v1618, %v1808
        %v1852 = vmul.f32 %v1620, %v1808
        %v1853 = vmul.f32 %v1622, %v1809
        %v1854 = vmul.f32 %v1624, %v1809
        %v1855 = vmul.f32 %v1626, %v1810
        %v1856 = vmul.f32 %v1628, %v1810
        %v1857 = vmul.f32 %v1630, %v1811
        %v1858 = vmul.f32 %v1632, %v1811
        %v1859 = vmul.f32 %v1634, %v1812
        %v1860 = vmul.f32 %v1636, %v1812
        %v1861 = vmul.f32 %v1638, %v1813
        %v1862 = vmul.f32 %v1640, %v1813
        %v1863 = vmul.f32 %v1642, %v1814
        %v1864 = vmul.f32 %v1644, %v1814
        %v1865 = vmul.f32 %v1646, %v1815
        %v1866 = vmul.f32 %v1648, %v1815
        %v1867 = vmul.f32 %v1650, %v1816
        %v1868 = vmul.f32 %v1652, %v1816
        %v1869 = vmul.f32 %v1654, %v1817
        %v1870 = vmul.f32 %v1656, %v1817
        %v1871 = vmul.f32 %v1658, %v1818
        %v1872 = vmul.f32 %v1660, %v1818
        %v1873 = vmul.f32 %v1662, %v1819
        %v1874 = vmul.f32 %v1664, %v1819
        %v1875 = vmul.f32 %v1666, %v1820
        %v1876 = vmul.f32 %v1668, %v1820
        %v1877 = vmul.f32 %v1670, %v1821
        %v1878 = vmul.f32 %v1672, %v1821
        %v1879 = vmul.f32 %v1674, %v1822
        %v1880 = vmul.f32 %v1676, %v1822
        %v1881 = vmul.f32 %v1678, %v1823
        %v1882 = vmul.f32 %v1680, %v1823
        %v1883 = vmul.f32 %v1682, %v1824
        %v1884 = vmul.f32 %v1684, %v1824
        %v1885 = vmul.f32 %v1686, %v1825
        %v1886 = vmul.f32 %v1688, %v1825
        %v1887 = vmul.f32 %v1690, %v1826
        %v1888 = vmul.f32 %v1692, %v1826
        %v1889 = vmul.f32 %v1694, %v1827
        %v1890 = vmul.f32 %v1696, %v1827
        %v1891 = vmul.f32 %v1698, %v1828
        %v1892 = vmul.f32 %v1700, %v1828
        %v1893 = vpack.c.bf16 %v1831, %v1829
        %v1894 = vpack.c.bf16 %v1832, %v1830
        %v1895 = vpack.c.bf16 %v1835, %v1833
        %v1896 = vpack.c.bf16 %v1836, %v1834
        %v1897 = vpack.c.bf16 %v1839, %v1837
        %v1898 = vpack.c.bf16 %v1840, %v1838
        %v1899 = vpack.c.bf16 %v1843, %v1841
        %v1900 = vpack.c.bf16 %v1844, %v1842
        %v1901 = vpack.c.bf16 %v1847, %v1845
        %v1902 = vpack.c.bf16 %v1848, %v1846
        %v1903 = vpack.c.bf16 %v1851, %v1849
        %v1904 = vpack.c.bf16 %v1852, %v1850
        %v1905 = vpack.c.bf16 %v1855, %v1853
        %v1906 = vpack.c.bf16 %v1856, %v1854
        %v1907 = vpack.c.bf16 %v1859, %v1857
        %v1908 = vpack.c.bf16 %v1860, %v1858
        %v1909 = vpack.c.bf16 %v1863, %v1861
        %v1910 = vpack.c.bf16 %v1864, %v1862
        %v1911 = vpack.c.bf16 %v1867, %v1865
        %v1912 = vpack.c.bf16 %v1868, %v1866
        %v1913 = vpack.c.bf16 %v1871, %v1869
        %v1914 = vpack.c.bf16 %v1872, %v1870
        %v1915 = vpack.c.bf16 %v1875, %v1873
        %v1916 = vpack.c.bf16 %v1876, %v1874
        %v1917 = vpack.c.bf16 %v1879, %v1877
        %v1918 = vpack.c.bf16 %v1880, %v1878
        %v1919 = vpack.c.bf16 %v1883, %v1881
        %v1920 = vpack.c.bf16 %v1884, %v1882
        %v1921 = vpack.c.bf16 %v1887, %v1885
        %v1922 = vpack.c.bf16 %v1888, %v1886
        %v1923 = vpack.c.bf16 %v1891, %v1889
        %v1924 = vpack.c.bf16 %v1892, %v1890
        %v1925 = vld [vmem:[#allocation4] sm:$0xff]
        %v1926 = vld [vmem:[#allocation4 + $0x8] sm:$0xff]
        %v1927 = vld [vmem:[#allocation4 + $0x10] sm:$0xff]
        %v1928 = vld [vmem:[#allocation4 + $0x18] sm:$0xff]
        %v1929 = vld [vmem:[#allocation4 + $0x20] sm:$0xff]
        %v1930 = vld [vmem:[#allocation4 + $0x28] sm:$0xff]
        %v1931 = vld [vmem:[#allocation4 + $0x30] sm:$0xff]
        %v1932 = vld [vmem:[#allocation4 + $0x38] sm:$0xff]
        %v1933 = vld [vmem:[#allocation4 + $0x40] sm:$0xff]
        %v1934 = vld [vmem:[#allocation4 + $0x48] sm:$0xff]
        %v1935 = vld [vmem:[#allocation4 + $0x50] sm:$0xff]
        %v1936 = vld [vmem:[#allocation4 + $0x58] sm:$0xff]
        %v1937 = vld [vmem:[#allocation4 + $0x60] sm:$0xff]
        %v1938 = vld [vmem:[#allocation4 + $0x68] sm:$0xff]
        %v1939 = vld [vmem:[#allocation4 + $0x70] sm:$0xff]
        %v1940 = vld [vmem:[#allocation4 + $0x78] sm:$0xff]
        %1941 = vmatprep.subr.bf16.mxu0 0
        %1942 = vmatpush1.bf16.msra.mxu0 %v1925
        %1943 = vmatprep.subr.bf16.mxu0 0
        %1944 = vmatpush1.bf16.msra.mxu0 %v1926
        %1945 = vmatprep.subr.bf16.mxu0 0
        %1946 = vmatpush1.bf16.msra.mxu0 %v1927
        %1947 = vmatprep.subr.bf16.mxu0 0
        %1948 = vmatpush1.bf16.msra.mxu0 %v1928
        %1949 = vmatprep.subr.bf16.mxu0 0
        %1950 = vmatpush1.bf16.msra.mxu0 %v1929
        %1951 = vmatprep.subr.bf16.mxu0 0
        %1952 = vmatpush1.bf16.msra.mxu0 %v1930
        %1953 = vmatprep.subr.bf16.mxu0 0
        %1954 = vmatpush1.bf16.msra.mxu0 %v1931
        %1955 = vmatprep.subr.bf16.mxu0 0
        %1956 = vmatpush1.bf16.msra.mxu0 %v1932
        %1957 = vmatprep.subr.bf16.mxu0 0
        %1958 = vmatpush1.bf16.msra.mxu0 %v1933
        %1959 = vmatprep.subr.bf16.mxu0 0
        %1960 = vmatpush1.bf16.msra.mxu0 %v1934
        %1961 = vmatprep.subr.bf16.mxu0 0
        %1962 = vmatpush1.bf16.msra.mxu0 %v1935
        %1963 = vmatprep.subr.bf16.mxu0 0
        %1964 = vmatpush1.bf16.msra.mxu0 %v1936
        %1965 = vmatprep.subr.bf16.mxu0 0
        %1966 = vmatpush1.bf16.msra.mxu0 %v1937
        %1967 = vmatprep.subr.bf16.mxu0 0
        %1968 = vmatpush1.bf16.msra.mxu0 %v1938
        %1969 = vmatprep.subr.bf16.mxu0 0
        %1970 = vmatpush1.bf16.msra.mxu0 %v1939
        %1971 = vmatprep.subr.bf16.mxu0 0
        %1972 = vmatpush1.bf16.msra.mxu0 %v1940
        %1973 = vmatprep.mubr.bf16.mxu0 %v1894
        %1974 = vmatmul.mubr.bf16.gmra.mrb[0].mxu0 %v1893
        %v1975 = vpop.f32.mrb[0].mxu0
        %v1976 = vadd.f32 0.0, %v1975
        %v1977 = vpop.f32.mrb[0].mxu0
        %v1978 = vpop.f32.mrb[0].mxu0
        %v1979 = vadd.f32 0.0, %v1978
        %v1980 = vpop.f32.mrb[0].mxu0
        %1981 = vmatprep.mubr.bf16.mxu0 %v1896
        %1982 = vmatmul.mubr.bf16.gmra.mrb[0].mxu0 %v1895
        %v1983 = vpop.f32.mrb[0].mxu0
        %v1984 = vadd.f32 0.0, %v1983
        %v1985 = vpop.f32.mrb[0].mxu0
        %v1986 = vpop.f32.mrb[0].mxu0
        %v1987 = vadd.f32 0.0, %v1986
        %v1988 = vpop.f32.mrb[0].mxu0
        %1989 = vmatprep.mubr.bf16.mxu0 %v1898
        %1990 = vmatmul.mubr.bf16.gmra.mrb[0].mxu0 %v1897
        %v1991 = vpop.f32.mrb[0].mxu0
        %v1992 = vadd.f32 0.0, %v1991
        %v1993 = vpop.f32.mrb[0].mxu0
        %v1994 = vpop.f32.mrb[0].mxu0
        %v1995 = vadd.f32 0.0, %v1994
        %v1996 = vpop.f32.mrb[0].mxu0
        %1997 = vmatprep.mubr.bf16.mxu0 %v1900
        %1998 = vmatmul.mubr.bf16.gmra.mrb[0].mxu0 %v1899
        %v1999 = vpop.f32.mrb[0].mxu0
        %v2000 = vadd.f32 0.0, %v1999
        %v2001 = vpop.f32.mrb[0].mxu0
        %v2002 = vpop.f32.mrb[0].mxu0
        %v2003 = vadd.f32 0.0, %v2002
        %v2004 = vpop.f32.mrb[0].mxu0
        %2005 = vmatprep.mubr.bf16.mxu0 %v1902
        %2006 = vmatmul.mubr.bf16.gmra.mrb[0].mxu0 %v1901
        %v2007 = vpop.f32.mrb[0].mxu0
        %v2008 = vadd.f32 0.0, %v2007
        %v2009 = vpop.f32.mrb[0].mxu0
        %v2010 = vpop.f32.mrb[0].mxu0
        %v2011 = vadd.f32 0.0, %v2010
        %v2012 = vpop.f32.mrb[0].mxu0
        %2013 = vmatprep.mubr.bf16.mxu0 %v1904
        %2014 = vmatmul.mubr.bf16.gmra.mrb[0].mxu0 %v1903
        %v2015 = vpop.f32.mrb[0].mxu0
        %v2016 = vadd.f32 0.0, %v2015
        %v2017 = vpop.f32.mrb[0].mxu0
        %v2018 = vpop.f32.mrb[0].mxu0
        %v2019 = vadd.f32 0.0, %v2018
        %v2020 = vpop.f32.mrb[0].mxu0
        %2021 = vmatprep.mubr.bf16.mxu0 %v1906
        %2022 = vmatmul.mubr.bf16.gmra.mrb[0].mxu0 %v1905
        %v2023 = vpop.f32.mrb[0].mxu0
        %v2024 = vadd.f32 0.0, %v2023
        %v2025 = vpop.f32.mrb[0].mxu0
        %v2026 = vpop.f32.mrb[0].mxu0
        %v2027 = vadd.f32 0.0, %v2026
        %v2028 = vpop.f32.mrb[0].mxu0
        %2029 = vmatprep.mubr.bf16.mxu0 %v1908
        %2030 = vmatmul.mubr.bf16.gmra.mrb[0].mxu0 %v1907
        %v2031 = vpop.f32.mrb[0].mxu0
        %v2032 = vadd.f32 0.0, %v2031
        %v2033 = vpop.f32.mrb[0].mxu0
        %v2034 = vpop.f32.mrb[0].mxu0
        %v2035 = vadd.f32 0.0, %v2034
        %v2036 = vpop.f32.mrb[0].mxu0
        %2037 = vmatprep.mubr.bf16.mxu0 %v1910
        %2038 = vmatmul.mubr.bf16.gmra.mrb[0].mxu0 %v1909
        %v2039 = vpop.f32.mrb[0].mxu0
        %v2040 = vadd.f32 0.0, %v2039
        %v2041 = vpop.f32.mrb[0].mxu0
        %v2042 = vpop.f32.mrb[0].mxu0
        %v2043 = vadd.f32 0.0, %v2042
        %v2044 = vpop.f32.mrb[0].mxu0
        %2045 = vmatprep.mubr.bf16.mxu0 %v1912
        %2046 = vmatmul.mubr.bf16.gmra.mrb[0].mxu0 %v1911
        %v2047 = vpop.f32.mrb[0].mxu0
        %v2048 = vadd.f32 0.0, %v2047
        %v2049 = vpop.f32.mrb[0].mxu0
        %v2050 = vpop.f32.mrb[0].mxu0
        %v2051 = vadd.f32 0.0, %v2050
        %v2052 = vpop.f32.mrb[0].mxu0
        %2053 = vmatprep.mubr.bf16.mxu0 %v1914
        %2054 = vmatmul.mubr.bf16.gmra.mrb[0].mxu0 %v1913
        %v2055 = vpop.f32.mrb[0].mxu0
        %v2056 = vadd.f32 0.0, %v2055
        %v2057 = vpop.f32.mrb[0].mxu0
        %v2058 = vpop.f32.mrb[0].mxu0
        %v2059 = vadd.f32 0.0, %v2058
        %v2060 = vpop.f32.mrb[0].mxu0
        %2061 = vmatprep.mubr.bf16.mxu0 %v1916
        %2062 = vmatmul.mubr.bf16.gmra.mrb[0].mxu0 %v1915
        %v2063 = vpop.f32.mrb[0].mxu0
        %v2064 = vadd.f32 0.0, %v2063
        %v2065 = vpop.f32.mrb[0].mxu0
        %v2066 = vpop.f32.mrb[0].mxu0
        %v2067 = vadd.f32 0.0, %v2066
        %v2068 = vpop.f32.mrb[0].mxu0
        %2069 = vmatprep.mubr.bf16.mxu0 %v1918
        %2070 = vmatmul.mubr.bf16.gmra.mrb[0].mxu0 %v1917
        %v2071 = vpop.f32.mrb[0].mxu0
        %v2072 = vadd.f32 0.0, %v2071
        %v2073 = vpop.f32.mrb[0].mxu0
        %v2074 = vpop.f32.mrb[0].mxu0
        %v2075 = vadd.f32 0.0, %v2074
        %v2076 = vpop.f32.mrb[0].mxu0
        %2077 = vmatprep.mubr.bf16.mxu0 %v1920
        %2078 = vmatmul.mubr.bf16.gmra.mrb[0].mxu0 %v1919
        %v2079 = vpop.f32.mrb[0].mxu0
        %v2080 = vadd.f32 0.0, %v2079
        %v2081 = vpop.f32.mrb[0].mxu0
        %v2082 = vpop.f32.mrb[0].mxu0
        %v2083 = vadd.f32 0.0, %v2082
        %v2084 = vpop.f32.mrb[0].mxu0
        %2085 = vmatprep.mubr.bf16.mxu0 %v1922
        %2086 = vmatmul.mubr.bf16.gmra.mrb[0].mxu0 %v1921
        %v2087 = vpop.f32.mrb[0].mxu0
        %v2088 = vadd.f32 0.0, %v2087
        %v2089 = vpop.f32.mrb[0].mxu0
        %v2090 = vpop.f32.mrb[0].mxu0
        %v2091 = vadd.f32 0.0, %v2090
        %v2092 = vpop.f32.mrb[0].mxu0
        %2093 = vmatprep.mubr.bf16.mxu0 %v1924
        %2094 = vmatmul.mubr.bf16.gmra.mrb[0].mxu0 %v1923
        %v2095 = vpop.f32.mrb[0].mxu0
        %v2096 = vadd.f32 0.0, %v2095
        %v2097 = vpop.f32.mrb[0].mxu0
        %v2098 = vpop.f32.mrb[0].mxu0
        %v2099 = vadd.f32 0.0, %v2098
        %v2100 = vpop.f32.mrb[0].mxu0
        %2101 = vdwg.mxu0
        %v2102 = vpack.c.bf16 %v1979, %v1976
        %v2103 = vpack.c.bf16 %v1987, %v1984
        %v2104 = vpack.c.bf16 %v1995, %v1992
        %v2105 = vpack.c.bf16 %v2003, %v2000
        %v2106 = vpack.c.bf16 %v2011, %v2008
        %v2107 = vpack.c.bf16 %v2019, %v2016
        %v2108 = vpack.c.bf16 %v2027, %v2024
        %v2109 = vpack.c.bf16 %v2035, %v2032
        %v2110 = vpack.c.bf16 %v2043, %v2040
        %v2111 = vpack.c.bf16 %v2051, %v2048
        %v2112 = vpack.c.bf16 %v2059, %v2056
        %v2113 = vpack.c.bf16 %v2067, %v2064
        %v2114 = vpack.c.bf16 %v2075, %v2072
        %v2115 = vpack.c.bf16 %v2083, %v2080
        %v2116 = vpack.c.bf16 %v2091, %v2088
        %v2117 = vpack.c.bf16 %v2099, %v2096
        %v2118 = vld [vmem:[#allocation11] sm:$0xf]
        %v2119 = vld [vmem:[#allocation11 + $0x4] sm:$0xf]
        %v2120 = vld [vmem:[#allocation11 + $0x8] sm:$0xf]
        %v2121 = vld [vmem:[#allocation11 + $0xc] sm:$0xf]
        %v2122 = vld [vmem:[#allocation11 + $0x10] sm:$0xf]
        %v2123 = vld [vmem:[#allocation11 + $0x14] sm:$0xf]
        %v2124 = vld [vmem:[#allocation11 + $0x18] sm:$0xf]
        %v2125 = vld [vmem:[#allocation11 + $0x1c] sm:$0xf]
        %v2126 = vld [vmem:[#allocation11 + $0x20] sm:$0xf]
        %v2127 = vld [vmem:[#allocation11 + $0x24] sm:$0xf]
        %v2128 = vld [vmem:[#allocation11 + $0x28] sm:$0xf]
        %v2129 = vld [vmem:[#allocation11 + $0x2c] sm:$0xf]
        %v2130 = vld [vmem:[#allocation11 + $0x30] sm:$0xf]
        %v2131 = vld [vmem:[#allocation11 + $0x34] sm:$0xf]
        %v2132 = vld [vmem:[#allocation11 + $0x38] sm:$0xf]
        %v2133 = vld [vmem:[#allocation11 + $0x3c] sm:$0xf]
        %v2134 = vld [vmem:[%s5] sm:$0x1]
        %v2136 = vlaneseq
        %v2137 = vshrl.u32 %v2136, 7
        %v2138 = vsub.s32 0, %v2137
        %v2139 = vrot.slane %v2134, %v2138
        %v2157 = vunpack.c.l.b16 %v2118
        %v2158 = vunpack.c.l.b16 %v2119
        %v2159 = vunpack.c.l.b16 %v2120
        %v2160 = vunpack.c.l.b16 %v2121
        %v2161 = vunpack.c.l.b16 %v2122
        %v2162 = vunpack.c.l.b16 %v2123
        %v2163 = vunpack.c.l.b16 %v2124
        %v2164 = vunpack.c.l.b16 %v2125
        %v2165 = vunpack.c.l.b16 %v2126
        %v2166 = vunpack.c.l.b16 %v2127
        %v2167 = vunpack.c.l.b16 %v2128
        %v2168 = vunpack.c.l.b16 %v2129
        %v2169 = vunpack.c.l.b16 %v2130
        %v2170 = vunpack.c.l.b16 %v2131
        %v2171 = vunpack.c.l.b16 %v2132
        %v2172 = vunpack.c.l.b16 %v2133
        %v2173 = vpack.c.b16 %v2158, %v2157
        %v2174 = vpack.c.b16 %v2160, %v2159
        %v2175 = vpack.c.b16 %v2162, %v2161
        %v2176 = vpack.c.b16 %v2164, %v2163
        %v2177 = vpack.c.b16 %v2166, %v2165
        %v2178 = vpack.c.b16 %v2168, %v2167
        %v2179 = vpack.c.b16 %v2170, %v2169
        %v2180 = vpack.c.b16 %v2172, %v2171
        %2189 = vmatprep.subr.bf16.mxu0 0
        %2190 = vmatpush1.bf16.msra.mxu0 %v2173
        %2191 = vmatprep.subr.bf16.mxu0 0
        %2192 = vmatpush1.bf16.msra.mxu0 %v2174
        %2193 = vmatprep.subr.bf16.mxu0 0
        %2194 = vmatpush1.bf16.msra.mxu0 %v2175
        %2195 = vmatprep.subr.bf16.mxu0 0
        %2196 = vmatpush1.bf16.msra.mxu0 %v2176
        %2197 = vmatprep.subr.bf16.mxu0 0
        %2198 = vmatpush1.bf16.msra.mxu0 %v2177
        %2199 = vmatprep.subr.bf16.mxu0 0
        %2200 = vmatpush1.bf16.msra.mxu0 %v2178
        %2201 = vmatprep.subr.bf16.mxu0 0
        %2202 = vmatpush1.bf16.msra.mxu0 %v2179
        %2203 = vmatprep.subr.bf16.mxu0 0
        %2204 = vmatpush1.bf16.msra.mxu0 %v2180
        %2205 = vmatprep.subr.bf16.mxu0 0
        %2206 = vmatpush1.bf16.msra.mxu0 0
        %2207 = vmatprep.subr.bf16.mxu0 0
        %2208 = vmatpush1.bf16.msra.mxu0 0
        %2209 = vmatprep.subr.bf16.mxu0 0
        %2210 = vmatpush1.bf16.msra.mxu0 0
        %2211 = vmatprep.subr.bf16.mxu0 0
        %2212 = vmatpush1.bf16.msra.mxu0 0
        %2213 = vmatprep.subr.bf16.mxu0 0
        %2214 = vmatpush1.bf16.msra.mxu0 0
        %2215 = vmatprep.subr.bf16.mxu0 0
        %2216 = vmatpush1.bf16.msra.mxu0 0
        %2217 = vmatprep.subr.bf16.mxu0 0
        %2218 = vmatpush1.bf16.msra.mxu0 0
        %2219 = vmatprep.subr.bf16.mxu0 0
        %2220 = vmatpush1.bf16.msra.mxu0 0
        %2221 = vmatprep.mubr.bf16.mxu0 0
        %2222 = vmatmul.mubr.bf16.gmra.mrb[0].mxu0 %v2102
        %v2223 = vpop.f32.mrb[0].mxu0
        %v2224 = vadd.f32 %v2139, %v2223
        %v2225 = vpop.f32.mrb[0].mxu0
        %v2226 = vpop.f32.mrb[0].mxu0
        %v2227 = vadd.f32 %v2139, %v2226
        %v2228 = vpop.f32.mrb[0].mxu0
        %2229 = vmatprep.mubr.bf16.mxu0 0
        %2230 = vmatmul.mubr.bf16.gmra.mrb[0].mxu0 %v2103
        %v2231 = vpop.f32.mrb[0].mxu0
        %v2232 = vadd.f32 %v2139, %v2231
        %v2233 = vpop.f32.mrb[0].mxu0
        %v2234 = vpop.f32.mrb[0].mxu0
        %v2235 = vadd.f32 %v2139, %v2234
        %v2236 = vpop.f32.mrb[0].mxu0
        %2237 = vmatprep.mubr.bf16.mxu0 0
        %2238 = vmatmul.mubr.bf16.gmra.mrb[0].mxu0 %v2104
        %v2239 = vpop.f32.mrb[0].mxu0
        %v2240 = vadd.f32 %v2139, %v2239
        %v2241 = vpop.f32.mrb[0].mxu0
        %v2242 = vpop.f32.mrb[0].mxu0
        %v2243 = vadd.f32 %v2139, %v2242
        %v2244 = vpop.f32.mrb[0].mxu0
        %2245 = vmatprep.mubr.bf16.mxu0 0
        %2246 = vmatmul.mubr.bf16.gmra.mrb[0].mxu0 %v2105
        %v2247 = vpop.f32.mrb[0].mxu0
        %v2248 = vadd.f32 %v2139, %v2247
        %v2249 = vpop.f32.mrb[0].mxu0
        %v2250 = vpop.f32.mrb[0].mxu0
        %v2251 = vadd.f32 %v2139, %v2250
        %v2252 = vpop.f32.mrb[0].mxu0
        %2253 = vmatprep.mubr.bf16.mxu0 0
        %2254 = vmatmul.mubr.bf16.gmra.mrb[0].mxu0 %v2106
        %v2255 = vpop.f32.mrb[0].mxu0
        %v2256 = vadd.f32 %v2139, %v2255
        %v2257 = vpop.f32.mrb[0].mxu0
        %v2258 = vpop.f32.mrb[0].mxu0
        %v2259 = vadd.f32 %v2139, %v2258
        %v2260 = vpop.f32.mrb[0].mxu0
        %2261 = vmatprep.mubr.bf16.mxu0 0
        %2262 = vmatmul.mubr.bf16.gmra.mrb[0].mxu0 %v2107
        %v2263 = vpop.f32.mrb[0].mxu0
        %v2264 = vadd.f32 %v2139, %v2263
        %v2265 = vpop.f32.mrb[0].mxu0
        %v2266 = vpop.f32.mrb[0].mxu0
        %v2267 = vadd.f32 %v2139, %v2266
        %v2268 = vpop.f32.mrb[0].mxu0
        %2269 = vmatprep.mubr.bf16.mxu0 0
        %2270 = vmatmul.mubr.bf16.gmra.mrb[0].mxu0 %v2108
        %v2271 = vpop.f32.mrb[0].mxu0
        %v2272 = vadd.f32 %v2139, %v2271
        %v2273 = vpop.f32.mrb[0].mxu0
        %v2274 = vpop.f32.mrb[0].mxu0
        %v2275 = vadd.f32 %v2139, %v2274
        %v2276 = vpop.f32.mrb[0].mxu0
        %2277 = vmatprep.mubr.bf16.mxu0 0
        %2278 = vmatmul.mubr.bf16.gmra.mrb[0].mxu0 %v2109
        %v2279 = vpop.f32.mrb[0].mxu0
        %v2280 = vadd.f32 %v2139, %v2279
        %v2281 = vpop.f32.mrb[0].mxu0
        %v2282 = vpop.f32.mrb[0].mxu0
        %v2283 = vadd.f32 %v2139, %v2282
        %v2284 = vpop.f32.mrb[0].mxu0
        %2285 = vmatprep.mubr.bf16.mxu0 0
        %2286 = vmatmul.mubr.bf16.gmra.mrb[0].mxu0 %v2110
        %v2287 = vpop.f32.mrb[0].mxu0
        %v2288 = vadd.f32 %v2139, %v2287
        %v2289 = vpop.f32.mrb[0].mxu0
        %v2290 = vpop.f32.mrb[0].mxu0
        %v2291 = vadd.f32 %v2139, %v2290
        %v2292 = vpop.f32.mrb[0].mxu0
        %2293 = vmatprep.mubr.bf16.mxu0 0
        %2294 = vmatmul.mubr.bf16.gmra.mrb[0].mxu0 %v2111
        %v2295 = vpop.f32.mrb[0].mxu0
        %v2296 = vadd.f32 %v2139, %v2295
        %v2297 = vpop.f32.mrb[0].mxu0
        %v2298 = vpop.f32.mrb[0].mxu0
        %v2299 = vadd.f32 %v2139, %v2298
        %v2300 = vpop.f32.mrb[0].mxu0
        %2301 = vmatprep.mubr.bf16.mxu0 0
        %2302 = vmatmul.mubr.bf16.gmra.mrb[0].mxu0 %v2112
        %v2303 = vpop.f32.mrb[0].mxu0
        %v2304 = vadd.f32 %v2139, %v2303
        %v2305 = vpop.f32.mrb[0].mxu0
        %v2306 = vpop.f32.mrb[0].mxu0
        %v2307 = vadd.f32 %v2139, %v2306
        %v2308 = vpop.f32.mrb[0].mxu0
        %2309 = vmatprep.mubr.bf16.mxu0 0
        %2310 = vmatmul.mubr.bf16.gmra.mrb[0].mxu0 %v2113
        %v2311 = vpop.f32.mrb[0].mxu0
        %v2312 = vadd.f32 %v2139, %v2311
        %v2313 = vpop.f32.mrb[0].mxu0
        %v2314 = vpop.f32.mrb[0].mxu0
        %v2315 = vadd.f32 %v2139, %v2314
        %v2316 = vpop.f32.mrb[0].mxu0
        %2317 = vmatprep.mubr.bf16.mxu0 0
        %2318 = vmatmul.mubr.bf16.gmra.mrb[0].mxu0 %v2114
        %v2319 = vpop.f32.mrb[0].mxu0
        %v2320 = vadd.f32 %v2139, %v2319
        %v2321 = vpop.f32.mrb[0].mxu0
        %v2322 = vpop.f32.mrb[0].mxu0
        %v2323 = vadd.f32 %v2139, %v2322
        %v2324 = vpop.f32.mrb[0].mxu0
        %2325 = vmatprep.mubr.bf16.mxu0 0
        %2326 = vmatmul.mubr.bf16.gmra.mrb[0].mxu0 %v2115
        %v2327 = vpop.f32.mrb[0].mxu0
        %v2328 = vadd.f32 %v2139, %v2327
        %v2329 = vpop.f32.mrb[0].mxu0
        %v2330 = vpop.f32.mrb[0].mxu0
        %v2331 = vadd.f32 %v2139, %v2330
        %v2332 = vpop.f32.mrb[0].mxu0
        %2333 = vmatprep.mubr.bf16.mxu0 0
        %2334 = vmatmul.mubr.bf16.gmra.mrb[0].mxu0 %v2116
        %v2335 = vpop.f32.mrb[0].mxu0
        %v2336 = vadd.f32 %v2139, %v2335
        %v2337 = vpop.f32.mrb[0].mxu0
        %v2338 = vpop.f32.mrb[0].mxu0
        %v2339 = vadd.f32 %v2139, %v2338
        %v2340 = vpop.f32.mrb[0].mxu0
        %2341 = vmatprep.mubr.bf16.mxu0 0
        %2342 = vmatmul.mubr.bf16.gmra.mrb[0].mxu0 %v2117
        %v2343 = vpop.f32.mrb[0].mxu0
        %v2344 = vadd.f32 %v2139, %v2343
        %v2345 = vpop.f32.mrb[0].mxu0
        %v2346 = vpop.f32.mrb[0].mxu0
        %v2347 = vadd.f32 %v2139, %v2346
        %v2348 = vpop.f32.mrb[0].mxu0
        %2349 = vdwg.mxu0
        %v2350 = vld [vmem:[%s315] sm:$0xff]
        %v2351 = vld [vmem:[%s315 + $0x8] sm:$0xff]
        %v2352 = vld [vmem:[%s315 + $0x10] sm:$0xff]
        %v2353 = vld [vmem:[%s315 + $0x18] sm:$0xff]
        %v2354 = vld [vmem:[%s315 + $0x20] sm:$0xff]
        %v2355 = vld [vmem:[%s315 + $0x28] sm:$0xff]
        %v2356 = vld [vmem:[%s315 + $0x30] sm:$0xff]
        %v2357 = vld [vmem:[%s315 + $0x38] sm:$0xff]
        %v2358 = vld [vmem:[%s315 + $0x40] sm:$0xff]
        %v2359 = vld [vmem:[%s315 + $0x48] sm:$0xff]
        %v2360 = vld [vmem:[%s315 + $0x50] sm:$0xff]
        %v2361 = vld [vmem:[%s315 + $0x58] sm:$0xff]
        %v2362 = vld [vmem:[%s315 + $0x60] sm:$0xff]
        %v2363 = vld [vmem:[%s315 + $0x68] sm:$0xff]
        %v2364 = vld [vmem:[%s315 + $0x70] sm:$0xff]
        %v2365 = vld [vmem:[%s315 + $0x78] sm:$0xff]
        %v2366 = vld [vmem:[%s315 + $0x80] sm:$0xff]
        %v2367 = vld [vmem:[%s315 + $0x88] sm:$0xff]
        %v2368 = vld [vmem:[%s315 + $0x90] sm:$0xff]
        %v2369 = vld [vmem:[%s315 + $0x98] sm:$0xff]
        %v2370 = vld [vmem:[%s315 + $0xa0] sm:$0xff]
        %v2371 = vld [vmem:[%s315 + $0xa8] sm:$0xff]
        %v2372 = vld [vmem:[%s315 + $0xb0] sm:$0xff]
        %v2373 = vld [vmem:[%s315 + $0xb8] sm:$0xff]
        %v2374 = vld [vmem:[%s315 + $0xc0] sm:$0xff]
        %v2375 = vld [vmem:[%s315 + $0xc8] sm:$0xff]
        %v2376 = vld [vmem:[%s315 + $0xd0] sm:$0xff]
        %v2377 = vld [vmem:[%s315 + $0xd8] sm:$0xff]
        %v2378 = vld [vmem:[%s315 + $0xe0] sm:$0xff]
        %v2379 = vld [vmem:[%s315 + $0xe8] sm:$0xff]
        %v2380 = vld [vmem:[%s315 + $0xf0] sm:$0xff]
        %v2381 = vld [vmem:[%s315 + $0xf8] sm:$0xff]
        %v2382 = vadd.f32 %v2350, %v2224
        %v2383 = vadd.f32 %v2351, %v2227
        %v2384 = vadd.f32 %v2352, %v2232
        %v2385 = vadd.f32 %v2353, %v2235
        %v2386 = vadd.f32 %v2354, %v2240
        %v2387 = vadd.f32 %v2355, %v2243
        %v2388 = vadd.f32 %v2356, %v2248
        %v2389 = vadd.f32 %v2357, %v2251
        %v2390 = vadd.f32 %v2358, %v2256
        %v2391 = vadd.f32 %v2359, %v2259
        %v2392 = vadd.f32 %v2360, %v2264
        %v2393 = vadd.f32 %v2361, %v2267
        %v2394 = vadd.f32 %v2362, %v2272
        %v2395 = vadd.f32 %v2363, %v2275
        %v2396 = vadd.f32 %v2364, %v2280
        %v2397 = vadd.f32 %v2365, %v2283
        %v2398 = vadd.f32 %v2366, %v2288
        %v2399 = vadd.f32 %v2367, %v2291
        %v2400 = vadd.f32 %v2368, %v2296
        %v2401 = vadd.f32 %v2369, %v2299
        %v2402 = vadd.f32 %v2370, %v2304
        %v2403 = vadd.f32 %v2371, %v2307
        %v2404 = vadd.f32 %v2372, %v2312
        %v2405 = vadd.f32 %v2373, %v2315
        %v2406 = vadd.f32 %v2374, %v2320
        %v2407 = vadd.f32 %v2375, %v2323
        %v2408 = vadd.f32 %v2376, %v2328
        %v2409 = vadd.f32 %v2377, %v2331
        %v2410 = vadd.f32 %v2378, %v2336
        %v2411 = vadd.f32 %v2379, %v2339
        %v2412 = vadd.f32 %v2380, %v2344
        %v2413 = vadd.f32 %v2381, %v2347
        %2414 = vst [vmem:[%s356] sm:$0xff] %v2382
        %2415 = vst [vmem:[%s356 + $0x8] sm:$0xff] %v2383
        %2416 = vst [vmem:[%s356 + $0x10] sm:$0xff] %v2384
        %2417 = vst [vmem:[%s356 + $0x18] sm:$0xff] %v2385
        %2418 = vst [vmem:[%s356 + $0x20] sm:$0xff] %v2386
        %2419 = vst [vmem:[%s356 + $0x28] sm:$0xff] %v2387
        %2420 = vst [vmem:[%s356 + $0x30] sm:$0xff] %v2388
        %2421 = vst [vmem:[%s356 + $0x38] sm:$0xff] %v2389
        %2422 = vst [vmem:[%s356 + $0x40] sm:$0xff] %v2390
        %2423 = vst [vmem:[%s356 + $0x48] sm:$0xff] %v2391
        %2424 = vst [vmem:[%s356 + $0x50] sm:$0xff] %v2392
        %2425 = vst [vmem:[%s356 + $0x58] sm:$0xff] %v2393
        %2426 = vst [vmem:[%s356 + $0x60] sm:$0xff] %v2394
        %2427 = vst [vmem:[%s356 + $0x68] sm:$0xff] %v2395
        %2428 = vst [vmem:[%s356 + $0x70] sm:$0xff] %v2396
        %2429 = vst [vmem:[%s356 + $0x78] sm:$0xff] %v2397
        %2430 = vst [vmem:[%s356 + $0x80] sm:$0xff] %v2398
        %2431 = vst [vmem:[%s356 + $0x88] sm:$0xff] %v2399
        %2432 = vst [vmem:[%s356 + $0x90] sm:$0xff] %v2400
        %2433 = vst [vmem:[%s356 + $0x98] sm:$0xff] %v2401
        %2434 = vst [vmem:[%s356 + $0xa0] sm:$0xff] %v2402
        %2435 = vst [vmem:[%s356 + $0xa8] sm:$0xff] %v2403
        %2436 = vst [vmem:[%s356 + $0xb0] sm:$0xff] %v2404
        %2437 = vst [vmem:[%s356 + $0xb8] sm:$0xff] %v2405
        %2438 = vst [vmem:[%s356 + $0xc0] sm:$0xff] %v2406
        %2439 = vst [vmem:[%s356 + $0xc8] sm:$0xff] %v2407
        %2440 = vst [vmem:[%s356 + $0xd0] sm:$0xff] %v2408
        %2441 = vst [vmem:[%s356 + $0xd8] sm:$0xff] %v2409
        %2442 = vst [vmem:[%s356 + $0xe0] sm:$0xff] %v2410
        %2443 = vst [vmem:[%s356 + $0xe8] sm:$0xff] %v2411
        %2444 = vst [vmem:[%s356 + $0xf0] sm:$0xff] %v2412
        %2445 = vst [vmem:[%s356 + $0xf8] sm:$0xff] %v2413
        %s2446 = sand.u32 %s187, 1
        %s2447 = scalar_lea.sflag [#allocation7], %s2446
        %s2448 = sand.u32 %s187, 1
        %s2449 = smul.addr %s2448, 256
        %s2450 = scalar_lea.vmem [#allocation13], %s2449
        // Predicated region
        $region65: #{tpu_custom_call.1} parent=43 // pred_check
          %p2451 = pneg %p197
        $region66: #{tpu_custom_call.1} parent=43 // pred_check_branch
          %2453 = sbr.rel (%p2451) target = $region68
        $region67: #{tpu_custom_call.1} parent=43 // pred_region
          %s2454 = smul.u32 32, %s32
          %s2456 = ssub.s32 4096, 4096
          %2457 = vsyncadd %s2447, %s2456
          %s2458 = smul.addr %s31, 32
          %s2459 = sadd.s32 %s2454, %s2458
          %s2460 = smul.addr %s2459, 128
          %s2461 = scalar_lea.hbm %s6, %s2460
          %s2462 = sshll.u32 %s2450, 4
          %s2463 = int_to_ptr.vmem [resolvable:$true] %s2462
          %2468 = dma.vmem_to_hbm [thread:$0]  %s2463, 4096, %s2461, %s2447, 128, 128, 8
        $region68: #{tpu_custom_call.1} parent=43 // pred_fallthru
          _
      $region44: #{tpu_custom_call.1} parent=5 // pred_fallthru
        _
      %p2469 = scmp.le.s32.totalorder 2, %s22
      // Predicated region
      $region69: #{tpu_custom_call.1} parent=5 // pred_check
        %p2470 = pneg %p2469
      $region70: #{tpu_custom_call.1} parent=5 // pred_check_branch
        %2472 = sbr.rel (%p2470) target = $region72
      $region71: #{tpu_custom_call.1} parent=5 // pred_region
        %s2473 = ssub.s32 %s22, 2
        // Predicated region
        $region73: #{tpu_custom_call.1} parent=71 // pred_check
          %p2474 = pneg %p203
        $region74: #{tpu_custom_call.1} parent=71 // pred_check_branch
          %2476 = sbr.rel (%p2474) target = $region76
        $region75: #{tpu_custom_call.1} parent=71 // pred_region
          %s2477 = sand.u32 %s188, 1
          %s2478 = scalar_lea.sflag [#allocation7], %s2477
          %s2479 = sand.u32 %s188, 1
          %s2480 = smul.addr %s2479, 256
          %s2481 = scalar_lea.vmem [#allocation13], %s2480
          %2482 = dma.done %s2478, 4096
        $region76: #{tpu_custom_call.1} parent=71 // pred_fallthru
          _
      $region72: #{tpu_custom_call.1} parent=5 // pred_fallthru
        _
    $region6: #{tpu_custom_call.1} parent=1 // loop_footer
      %s26 = sadd.s32 1, %s22
    $region7: #{tpu_custom_call.1} parent=1 // loop_footer_branch
      %21 = sbr.rel target = $region3
    $region8: #{tpu_custom_call.1} parent=1 // loop_exit
      _
    %2483 = vsyncpa [#allocation6], 1
    %s2484 = scalar_lea.sflag [#allocation6], 1
    %2485 = vsyncpa %s2484, 1
    %2486 = vsyncpa [#allocation9], 1
    %s2487 = scalar_lea.sflag [#allocation9], 1
    %2488 = vsyncpa %s2487, 1
    %2489 = vsyncpa [#allocation12], 1
    %2490 = vsyncpa [#allocation7], 1
    %s2491 = scalar_lea.sflag [#allocation7], 1
    %2492 = vsyncpa %s2491, 1

</llo_original>
